<compile_context>
chip_gen: v7x
topology: tpu7x:2x2x1
jax: 0.10.0
libtpu: 0.0.40
codegen_flags: <defaults>
</compile_context>

<pallas_src>
import functools

import jax
import jax.numpy as jnp
import numpy as np
from jax import lax
from jax.experimental import pallas as pl
from jax.experimental.pallas import tpu as pltpu

EPS = 1e-5   # PyTorch BatchNorm1d default eps
K = 5        # conv kernel size for conv1 / conv2


def _shift_rows(v, k):
    """result[r] = v[(r + k) % n]  (rows shifted toward index 0 by k).

    Single XLU rotate (pltpu.roll); the rows that wrap around carry garbage and
    are masked out of every statistic / mean by the callers.
    """
    if k == 0:
        return v
    n = v.shape[0]
    return pltpu.roll(v, shift=n - k, axis=0)


def cnn_block_kernel(x_ref, w1_ref, w2_ref, wp_ref, vec_ref, out_ref, h1_scr,
                     *, B, T, C, H):
    f32 = jnp.float32
    T1 = T - (K - 1)          # conv1 output length (per batch)
    Tp = T // 2               # pooled slab length per batch (T2 valid + garbage tail)
    T2 = T1 // 2              # MaxPool output length (per batch)
    T3 = T2 - (K - 1)         # conv2 output length (per batch)
    N1 = B * T                # conv1 slab rows (batch folded into M)
    Np = B * Tp               # pooled slab rows

    # Packed per-channel vectors: rows = b1, g1, be1, b2, g2, be2, bp, pad.
    vec = vec_ref[...]
    b1, g1, be1 = vec[0:1, :], vec[1:2, :], vec[2:3, :]
    b2, g2, be2 = vec[3:4, :], vec[4:5, :], vec[5:6, :]
    bp = vec[6:7, :]

    # ---- conv1 (k=5, valid) + bias + ReLU: K roll-based tap matmuls over the
    # batch-concatenated time axis (input stays in vregs, no im2col). ----
    x = x_ref[...]                                              # (N1, C)
    w1 = w1_ref[...]                                            # (K*C, H)
    acc1 = jnp.dot(x, w1[0:C, :], preferred_element_type=f32)
    for k in range(1, K):
        acc1 = acc1 + jnp.dot(_shift_rows(x, k), w1[k * C:(k + 1) * C, :],
                              preferred_element_type=f32)
    h1 = jnp.maximum(acc1 + b1, 0.0)                            # (N1, H)

    # Row r is a real conv1 output only if it doesn't straddle a batch edge:
    # r in [b*T, b*T+T1).  (B is tiny & static -> trace-time loop, no int mod.)
    ri = lax.broadcasted_iota(jnp.int32, (N1, 1), 0)
    valid1 = jnp.zeros((N1, 1), f32)
    for b in range(B):
        valid1 = valid1 + ((ri >= b * T) & (ri < b * T + T1)).astype(f32)

    # ---- bn1: training-mode batch stats over the B*T1 valid rows, single pass ----
    inv_n1 = 1.0 / (B * T1)
    hm = h1 * valid1                                            # zero garbage rows
    m1 = jnp.sum(hm, axis=0, keepdims=True) * inv_n1
    e1 = jnp.sum(hm * h1, axis=0, keepdims=True) * inv_n1
    v1 = e1 - m1 * m1                                           # biased variance
    h1n = (h1 - m1) * lax.rsqrt(v1 + EPS) * g1 + be1
    # Dropout(p=0) is the identity.
    # TODO(synk): dropout_rate > 0 (stochastic PyTorch-RNG mask) is not modeled.

    # ---- MaxPool1d(k=2, s=2): two stride-2 sublane reads + one vector max ----
    h1_scr[...] = h1n
    hp = jnp.maximum(h1_scr[pl.ds(0, Np, stride=2), :],
                     h1_scr[pl.ds(1, Np, stride=2), :])         # (Np, H)

    # ---- conv2 (k=5, valid) + bias + ReLU: roll-based taps, hp stays in vregs ----
    w2 = w2_ref[...]                                            # (K*H, H)
    acc2 = jnp.dot(hp, w2[0:H, :], preferred_element_type=f32)
    for k in range(1, K):
        acc2 = acc2 + jnp.dot(_shift_rows(hp, k), w2[k * H:(k + 1) * H, :],
                              preferred_element_type=f32)
    h2 = jnp.maximum(acc2 + b2, 0.0)                            # (Np, H)

    # ---- fused BN2 stats + per-batch time-mean: one (B+1,Np) x (Np,2H) matmul ----
    # sel[b, r]   = 1/T3 if pooled-slab row r is a valid conv2 output of batch b
    #               (r in [b*Tp, b*Tp + T3)); boundary / wrapped rows get 0.
    # wvalid[0,r] = 1/T3 if r is valid for any batch.
    bi = lax.broadcasted_iota(jnp.int32, (B, Np), 0)
    rj = lax.broadcasted_iota(jnp.int32, (B, Np), 1)
    sel = jnp.where((rj >= bi * Tp) & (rj < bi * Tp + T3),
                    1.0 / T3, 0.0).astype(f32)                  # (B, Np)
    wvalid = jnp.sum(sel, axis=0, keepdims=True)                # (1, Np)
    lhs = jnp.concatenate([sel, wvalid], axis=0)                # (B+1, Np)
    rhs = jnp.concatenate([h2, h2 * h2], axis=1)                # (Np, 2H)
    stat = jnp.dot(lhs, rhs, preferred_element_type=f32)        # (B+1, 2H)
    hmean = stat[0:B, 0:H]                  # per-batch time-mean of h2 (pre-BN2)
    m2 = stat[B:B + 1, 0:H] * (1.0 / B)                         # E[h2]   over valid rows
    e2 = stat[B:B + 1, H:2 * H] * (1.0 / B)                     # E[h2^2] over valid rows
    v2 = e2 - m2 * m2

    # ---- bn2 affine applied after the time-mean (commutes exactly) + head ----
    # conv_attention -> F.softmax over the size-1 transposed axis is identically 1,
    # so the attention branch is numerically dead; by linearity the head collapses:
    #   (pred * 1).mean(time)  ==  mean_t(bn2(h2)) @ Wp + bp
    # NOTE: if the softmax axis ever becomes a real (>1) axis this must be revisited.
    hmean_n = (hmean - m2) * lax.rsqrt(v2 + EPS) * g2 + be2     # (B, H)
    out_ref[...] = jnp.dot(hmean_n, wp_ref[...],
                           preferred_element_type=f32) + bp     # (B, O)


def cnn_block_forward(x_nct, p):
    """x_nct: PyTorch-layout input [B, C_in, T]; returns [B, out_dims]."""
    x_nct = x_nct.astype(jnp.float32)
    B, C, T = x_nct.shape
    H = p["w1"].shape[2]
    O = p["wp"].shape[1]
    T1 = T - (K - 1)
    T2 = T1 // 2
    T3 = T2 - (K - 1)
    assert T1 >= 2 and T1 % 2 == 0, "conv1 output length must be even for MaxPool(2,2)"
    assert T3 >= 1, "sequence too short for conv2"
    assert p["g1"].shape[1] == H == p["wp"].shape[0], "hidden_dims must equal out_dims"

    # Layout plumbing only (channels onto lanes); no im2col blowup, no x_col HBM slab.
    x_slab = jnp.transpose(x_nct, (0, 2, 1)).reshape(B * T, C)      # (B*T, C)
    w1_flat = p["w1"].reshape(K * C, H)                             # row order (k, c)
    w2_flat = p["w2"].reshape(K * H, H)                             # row order (k, h)
    vecs = jnp.concatenate(
        [p["b1"], p["g1"], p["be1"], p["b2"], p["g2"], p["be2"], p["bp"],
         jnp.zeros((1, H), jnp.float32)], axis=0)                   # (8, H)

    N1, Np = B * T, B * (T // 2)
    flops = 2 * (N1 * C * H * K + Np * H * H * K + (B + 1) * Np * 2 * H + B * H * O)
    bytes_accessed = 4 * (N1 * C + K * C * H + K * H * H + H * O + 8 * H + B * O)

    kernel = functools.partial(cnn_block_kernel, B=B, T=T, C=C, H=H)
    vmem = lambda: pl.BlockSpec(memory_space=pltpu.MemorySpace.VMEM)

    # Single program (no grid): total useful data is < 100 KB, so everything fits
    # comfortably in VMEM on v5e/v6e (128 MiB) and v7x (64 MiB).
    # TODO(synk): for large-B NRI workloads add a batch-chunked grid with a
    # two-pass/accumulated BatchNorm and "parallel" semantics (v7x megacore).
    return pl.pallas_call(
        kernel,
        out_shape=jax.ShapeDtypeStruct((B, O), jnp.float32),
        in_specs=[vmem() for _ in range(5)],
        out_specs=vmem(),
        scratch_shapes=[
            pltpu.VMEM((B * T, H), jnp.float32),   # bn1 output for stride-2 pooling reads
        ],
        compiler_params=pltpu.CompilerParams(
            vmem_limit_bytes=4 * 1024 * 1024),
        cost_estimate=pl.CostEstimate(flops=flops, transcendentals=2 * H,
                                      bytes_accessed=bytes_accessed),
    )(x_slab, w1_flat, w2_flat, p["wp"], vecs)


def init_params(key, in_dims, hidden_dims, out_dims):
    """Deterministic parameter init (shapes from CNNBlock.__init__).

    NOTE: the module's forward is only shape-consistent when hidden_dims == out_dims
    (conv1 outputs out_dims channels but bn1 normalizes hidden_dims channels).
    Weights stored kernel-layout: conv (k, C_in, C_out), 1x1 conv (C_in, C_out).
    wa/ba (conv_attention) are kept for module fidelity but do not affect the
    output (softmax over a size-1 axis makes the attention identically 1).
    """
    assert hidden_dims == out_dims
    ks = jax.random.split(key, 8)

    def u(k, shape, fan_in):
        bound = 1.0 / (fan_in ** 0.5)
        return jax.random.uniform(k, shape, jnp.float32, -bound, bound)

    return dict(
        w1=u(ks[0], (K, in_dims, hidden_dims), in_dims * K),
        b1=u(ks[1], (1, hidden_dims), in_dims * K),
        g1=jnp.ones((1, hidden_dims), jnp.float32),
        be1=jnp.zeros((1, hidden_dims), jnp.float32),
        w2=u(ks[2], (K, hidden_dims, hidden_dims), hidden_dims * K),
        b2=u(ks[3], (1, hidden_dims), hidden_dims * K),
        g2=jnp.ones((1, hidden_dims), jnp.float32),
        be2=jnp.zeros((1, hidden_dims), jnp.float32),
        wp=u(ks[4], (hidden_dims, out_dims), hidden_dims),
        bp=u(ks[5], (1, out_dims), hidden_dims),
        wa=u(ks[6], (1, hidden_dims), hidden_dims),
        ba=u(ks[7], (1, 1), hidden_dims),
    )


def reference_forward(x_nct, p):
    """Pure-JAX reference with the original module's semantics (verification)."""
    prec = jax.lax.Precision.HIGHEST   # keep the reference at ~f32 matmul precision
    x = jnp.transpose(x_nct, (0, 2, 1)).astype(jnp.float32)
    B, T, _ = x.shape
    T1 = T - (K - 1)
    h1 = sum(jnp.einsum("btc,ch->bth", x[:, k:k + T1, :], p["w1"][k], precision=prec)
             for k in range(K)) + p["b1"]
    h1 = jnp.maximum(h1, 0.0)
    m1 = h1.mean((0, 1), keepdims=True)
    v1 = ((h1 - m1) ** 2).mean((0, 1), keepdims=True)
    h1 = (h1 - m1) / jnp.sqrt(v1 + EPS) * p["g1"] + p["be1"]
    T2 = T1 // 2
    hp = jnp.maximum(h1[:, 0:2 * T2:2, :], h1[:, 1:2 * T2:2, :])
    T3 = T2 - (K - 1)
    h2 = sum(jnp.einsum("btc,ch->bth", hp[:, k:k + T3, :], p["w2"][k], precision=prec)
             for k in range(K)) + p["b2"]
    h2 = jnp.maximum(h2, 0.0)
    m2 = h2.mean((0, 1), keepdims=True)
    v2 = ((h2 - m2) ** 2).mean((0, 1), keepdims=True)
    h2 = (h2 - m2) / jnp.sqrt(v2 + EPS) * p["g2"] + p["be2"]
    pred = jnp.einsum("bth,ho->bto", h2, p["wp"], precision=prec) + p["bp"]
    att = jnp.sum(h2 * p["wa"], axis=-1, keepdims=True) + p["ba"]
    att = jnp.ones_like(att)     # F.softmax over the size-1 transposed axis == 1
    return (pred * att).mean(axis=1)


if __name__ == "__main__":
    B, C_IN, T = 2, 4, 32
    HID = OUT = 32               # hidden_dims must equal out_dims (see init_params)
    key = jax.random.PRNGKey(0)
    kx, kp = jax.random.split(key)

    x = jax.random.normal(kx, (B, C_IN, T), jnp.float32)   # PyTorch NCW input layout
    params = init_params(kp, C_IN, HID, OUT)

    out = jax.jit(cnn_block_forward)(x, params)
    out = jax.block_until_ready(out)

    ref = reference_forward(x, params)
    np.testing.assert_allclose(np.asarray(out), np.asarray(ref), rtol=1e-4, atol=1e-4)

    print("KERNEL_OK")
</pallas_src>

<mosaic_0001>
module attributes {stable_mosaic.version = 11 : i64} {
  func.func @cnn_block_kernel(%arg0: memref<64x4xf32, #tpu.memory_space<vmem>>, %arg1: memref<20x32xf32, #tpu.memory_space<vmem>>, %arg2: memref<160x32xf32, #tpu.memory_space<vmem>>, %arg3: memref<32x32xf32, #tpu.memory_space<vmem>>, %arg4: memref<8x32xf32, #tpu.memory_space<vmem>>, %arg5: memref<2x32xf32, #tpu.memory_space<vmem>>, %arg6: memref<64x32xf32, #tpu.memory_space<vmem>>) attributes {dimension_semantics = [], scalar_prefetch = 0 : i64, scratch_operands = 1 : i64, tpu.core_type = #tpu.core_type<tc>} {
    %c0 = arith.constant 0 : index
    %c0_0 = arith.constant 0 : index
    %0 = vector.load %arg4[%c0, %c0_0] : memref<8x32xf32, #tpu.memory_space<vmem>>, vector<8x32xf32>
    %1 = vector.extract_strided_slice %0 {offsets = [0, 0], sizes = [1, 32], strides = [1, 1]} : vector<8x32xf32> to vector<1x32xf32>
    %2 = vector.extract_strided_slice %0 {offsets = [1, 0], sizes = [1, 32], strides = [1, 1]} : vector<8x32xf32> to vector<1x32xf32>
    %3 = vector.extract_strided_slice %0 {offsets = [2, 0], sizes = [1, 32], strides = [1, 1]} : vector<8x32xf32> to vector<1x32xf32>
    %4 = vector.extract_strided_slice %0 {offsets = [3, 0], sizes = [1, 32], strides = [1, 1]} : vector<8x32xf32> to vector<1x32xf32>
    %5 = vector.extract_strided_slice %0 {offsets = [4, 0], sizes = [1, 32], strides = [1, 1]} : vector<8x32xf32> to vector<1x32xf32>
    %6 = vector.extract_strided_slice %0 {offsets = [5, 0], sizes = [1, 32], strides = [1, 1]} : vector<8x32xf32> to vector<1x32xf32>
    %7 = vector.extract_strided_slice %0 {offsets = [6, 0], sizes = [1, 32], strides = [1, 1]} : vector<8x32xf32> to vector<1x32xf32>
    %c0_1 = arith.constant 0 : index
    %c0_2 = arith.constant 0 : index
    %8 = vector.load %arg0[%c0_1, %c0_2] : memref<64x4xf32, #tpu.memory_space<vmem>>, vector<64x4xf32>
    %c0_3 = arith.constant 0 : index
    %c0_4 = arith.constant 0 : index
    %9 = vector.load %arg1[%c0_3, %c0_4] : memref<20x32xf32, #tpu.memory_space<vmem>>, vector<20x32xf32>
    %10 = vector.extract_strided_slice %9 {offsets = [0, 0], sizes = [4, 32], strides = [1, 1]} : vector<20x32xf32> to vector<4x32xf32>
    %cst = arith.constant dense<0.000000e+00> : vector<64x32xf32>
    %11 = tpu.matmul %8, %10, %cst {dimension_numbers = #tpu.dot_dimension_numbers<[1], [0], [0], [1], [0, 0, 1, 1], [], []>} : vector<64x4xf32>, vector<4x32xf32>, vector<64x32xf32> -> vector<64x32xf32>
    %c63_i32 = arith.constant 63 : i32
    %12 = tpu.dynamic_rotate %8 by %c63_i32 dim 0 : vector<64x4xf32>, i32 -> vector<64x4xf32>
    %13 = vector.extract_strided_slice %9 {offsets = [4, 0], sizes = [4, 32], strides = [1, 1]} : vector<20x32xf32> to vector<4x32xf32>
    %cst_5 = arith.constant dense<0.000000e+00> : vector<64x32xf32>
    %14 = tpu.matmul %12, %13, %cst_5 {dimension_numbers = #tpu.dot_dimension_numbers<[1], [0], [0], [1], [0, 0, 1, 1], [], []>} : vector<64x4xf32>, vector<4x32xf32>, vector<64x32xf32> -> vector<64x32xf32>
    %15 = arith.addf %11, %14 : vector<64x32xf32>
    %c62_i32 = arith.constant 62 : i32
    %16 = tpu.dynamic_rotate %8 by %c62_i32 dim 0 : vector<64x4xf32>, i32 -> vector<64x4xf32>
    %17 = vector.extract_strided_slice %9 {offsets = [8, 0], sizes = [4, 32], strides = [1, 1]} : vector<20x32xf32> to vector<4x32xf32>
    %cst_6 = arith.constant dense<0.000000e+00> : vector<64x32xf32>
    %18 = tpu.matmul %16, %17, %cst_6 {dimension_numbers = #tpu.dot_dimension_numbers<[1], [0], [0], [1], [0, 0, 1, 1], [], []>} : vector<64x4xf32>, vector<4x32xf32>, vector<64x32xf32> -> vector<64x32xf32>
    %19 = arith.addf %15, %18 : vector<64x32xf32>
    %c61_i32 = arith.constant 61 : i32
    %20 = tpu.dynamic_rotate %8 by %c61_i32 dim 0 : vector<64x4xf32>, i32 -> vector<64x4xf32>
    %21 = vector.extract_strided_slice %9 {offsets = [12, 0], sizes = [4, 32], strides = [1, 1]} : vector<20x32xf32> to vector<4x32xf32>
    %cst_7 = arith.constant dense<0.000000e+00> : vector<64x32xf32>
    %22 = tpu.matmul %20, %21, %cst_7 {dimension_numbers = #tpu.dot_dimension_numbers<[1], [0], [0], [1], [0, 0, 1, 1], [], []>} : vector<64x4xf32>, vector<4x32xf32>, vector<64x32xf32> -> vector<64x32xf32>
    %23 = arith.addf %19, %22 : vector<64x32xf32>
    %c60_i32 = arith.constant 60 : i32
    %24 = tpu.dynamic_rotate %8 by %c60_i32 dim 0 : vector<64x4xf32>, i32 -> vector<64x4xf32>
    %25 = vector.extract_strided_slice %9 {offsets = [16, 0], sizes = [4, 32], strides = [1, 1]} : vector<20x32xf32> to vector<4x32xf32>
    %cst_8 = arith.constant dense<0.000000e+00> : vector<64x32xf32>
    %26 = tpu.matmul %24, %25, %cst_8 {dimension_numbers = #tpu.dot_dimension_numbers<[1], [0], [0], [1], [0, 0, 1, 1], [], []>} : vector<64x4xf32>, vector<4x32xf32>, vector<64x32xf32> -> vector<64x32xf32>
    %27 = arith.addf %23, %26 : vector<64x32xf32>
    %28 = vector.broadcast %1 : vector<1x32xf32> to vector<64x32xf32>
    %29 = arith.addf %27, %28 : vector<64x32xf32>
    %cst_9 = arith.constant 0.000000e+00 : f32
    %30 = vector.broadcast %cst_9 : f32 to vector<64x32xf32>
    %31 = arith.maximumf %29, %30 : vector<64x32xf32>
    %32 = tpu.iota {dimensions = array<i32: 0>} : vector<64x1xi32>
    %cst_10 = arith.constant 0.000000e+00 : f32
    %33 = vector.broadcast %cst_10 : f32 to vector<64x1xf32>
    %c0_i32 = arith.constant 0 : i32
    %34 = vector.broadcast %c0_i32 : i32 to vector<64x1xi32>
    %35 = arith.cmpi sge, %32, %34 : vector<64x1xi32>
    %c28_i32 = arith.constant 28 : i32
    %36 = vector.broadcast %c28_i32 : i32 to vector<64x1xi32>
    %37 = arith.cmpi slt, %32, %36 : vector<64x1xi32>
    %38 = arith.andi %35, %37 : vector<64x1xi1>
    %39 = arith.extui %38 : vector<64x1xi1> to vector<64x1xi32>
    %40 = arith.sitofp %39 : vector<64x1xi32> to vector<64x1xf32>
    %41 = arith.addf %33, %40 : vector<64x1xf32>
    %c32_i32 = arith.constant 32 : i32
    %42 = vector.broadcast %c32_i32 : i32 to vector<64x1xi32>
    %43 = arith.cmpi sge, %32, %42 : vector<64x1xi32>
    %c60_i32_11 = arith.constant 60 : i32
    %44 = vector.broadcast %c60_i32_11 : i32 to vector<64x1xi32>
    %45 = arith.cmpi slt, %32, %44 : vector<64x1xi32>
    %46 = arith.andi %43, %45 : vector<64x1xi1>
    %47 = arith.extui %46 : vector<64x1xi1> to vector<64x1xi32>
    %48 = arith.sitofp %47 : vector<64x1xi32> to vector<64x1xf32>
    %49 = arith.addf %41, %48 : vector<64x1xf32>
    %50 = vector.broadcast %49 : vector<64x1xf32> to vector<64x32xf32>
    %51 = arith.mulf %31, %50 : vector<64x32xf32>
    %cst_12 = arith.constant dense<0.000000e+00> : vector<32xf32>
    %52 = vector.multi_reduction <add>, %51, %cst_12 [0] : vector<64x32xf32> to vector<32xf32>
    %53 = vector.shape_cast %52 : vector<32xf32> to vector<1x32xf32>
    %cst_13 = arith.constant 0.0178571437 : f32
    %54 = vector.broadcast %cst_13 : f32 to vector<1x32xf32>
    %55 = arith.mulf %53, %54 : vector<1x32xf32>
    %56 = arith.mulf %51, %31 : vector<64x32xf32>
    %cst_14 = arith.constant dense<0.000000e+00> : vector<32xf32>
    %57 = vector.multi_reduction <add>, %56, %cst_14 [0] : vector<64x32xf32> to vector<32xf32>
    %58 = vector.shape_cast %57 : vector<32xf32> to vector<1x32xf32>
    %cst_15 = arith.constant 0.0178571437 : f32
    %59 = vector.broadcast %cst_15 : f32 to vector<1x32xf32>
    %60 = arith.mulf %58, %59 : vector<1x32xf32>
    %61 = arith.mulf %55, %55 : vector<1x32xf32>
    %62 = arith.subf %60, %61 : vector<1x32xf32>
    %63 = vector.broadcast %55 : vector<1x32xf32> to vector<64x32xf32>
    %64 = arith.subf %31, %63 : vector<64x32xf32>
    %cst_16 = arith.constant 9.99999974E-6 : f32
    %65 = vector.broadcast %cst_16 : f32 to vector<1x32xf32>
    %66 = arith.addf %62, %65 : vector<1x32xf32>
    %67 = math.rsqrt %66 : vector<1x32xf32>
    %68 = vector.broadcast %67 : vector<1x32xf32> to vector<64x32xf32>
    %69 = arith.mulf %64, %68 : vector<64x32xf32>
    %70 = vector.broadcast %2 : vector<1x32xf32> to vector<64x32xf32>
    %71 = arith.mulf %69, %70 : vector<64x32xf32>
    %72 = vector.broadcast %3 : vector<1x32xf32> to vector<64x32xf32>
    %73 = arith.addf %71, %72 : vector<64x32xf32>
    %c0_17 = arith.constant 0 : index
    %c0_18 = arith.constant 0 : index
    %74 = vector.load %arg6[%c0_17, %c0_18] : memref<64x32xf32, #tpu.memory_space<vmem>>, vector<64x32xf32>
    tpu.vector_store %arg6[%c0_17, %c0_18], %73 {strides = array<i32>} : memref<64x32xf32, #tpu.memory_space<vmem>>, vector<64x32xf32>,
    %c0_19 = arith.constant 0 : index
    %c0_20 = arith.constant 0 : index
    %75 = tpu.strided_load %arg6[%c0_19, %c0_20] {strides = array<i32: 2, 1>} : memref<64x32xf32, #tpu.memory_space<vmem>>, vector<32x32xf32>
    %c1 = arith.constant 1 : index
    %c0_21 = arith.constant 0 : index
    %76 = tpu.strided_load %arg6[%c1, %c0_21] {strides = array<i32: 2, 1>} : memref<64x32xf32, #tpu.memory_space<vmem>>, vector<32x32xf32>
    %77 = arith.maximumf %75, %76 : vector<32x32xf32>
    %c0_22 = arith.constant 0 : index
    %c0_23 = arith.constant 0 : index
    %78 = vector.load %arg2[%c0_22, %c0_23] : memref<160x32xf32, #tpu.memory_space<vmem>>, vector<160x32xf32>
    %79 = vector.extract_strided_slice %78 {offsets = [0, 0], sizes = [32, 32], strides = [1, 1]} : vector<160x32xf32> to vector<32x32xf32>
    %cst_24 = arith.constant dense<0.000000e+00> : vector<32x32xf32>
    %80 = tpu.matmul %77, %79, %cst_24 {dimension_numbers = #tpu.dot_dimension_numbers<[1], [0], [0], [1], [0, 0, 1, 1], [], []>} : vector<32x32xf32>, vector<32x32xf32>, vector<32x32xf32> -> vector<32x32xf32>
    %c31_i32 = arith.constant 31 : i32
    %81 = tpu.dynamic_rotate %77 by %c31_i32 dim 0 : vector<32x32xf32>, i32 -> vector<32x32xf32>
    %82 = vector.extract_strided_slice %78 {offsets = [32, 0], sizes = [32, 32], strides = [1, 1]} : vector<160x32xf32> to vector<32x32xf32>
    %cst_25 = arith.constant dense<0.000000e+00> : vector<32x32xf32>
    %83 = tpu.matmul %81, %82, %cst_25 {dimension_numbers = #tpu.dot_dimension_numbers<[1], [0], [0], [1], [0, 0, 1, 1], [], []>} : vector<32x32xf32>, vector<32x32xf32>, vector<32x32xf32> -> vector<32x32xf32>
    %84 = arith.addf %80, %83 : vector<32x32xf32>
    %c30_i32 = arith.constant 30 : i32
    %85 = tpu.dynamic_rotate %77 by %c30_i32 dim 0 : vector<32x32xf32>, i32 -> vector<32x32xf32>
    %86 = vector.extract_strided_slice %78 {offsets = [64, 0], sizes = [32, 32], strides = [1, 1]} : vector<160x32xf32> to vector<32x32xf32>
    %cst_26 = arith.constant dense<0.000000e+00> : vector<32x32xf32>
    %87 = tpu.matmul %85, %86, %cst_26 {dimension_numbers = #tpu.dot_dimension_numbers<[1], [0], [0], [1], [0, 0, 1, 1], [], []>} : vector<32x32xf32>, vector<32x32xf32>, vector<32x32xf32> -> vector<32x32xf32>
    %88 = arith.addf %84, %87 : vector<32x32xf32>
    %c29_i32 = arith.constant 29 : i32
    %89 = tpu.dynamic_rotate %77 by %c29_i32 dim 0 : vector<32x32xf32>, i32 -> vector<32x32xf32>
    %90 = vector.extract_strided_slice %78 {offsets = [96, 0], sizes = [32, 32], strides = [1, 1]} : vector<160x32xf32> to vector<32x32xf32>
    %cst_27 = arith.constant dense<0.000000e+00> : vector<32x32xf32>
    %91 = tpu.matmul %89, %90, %cst_27 {dimension_numbers = #tpu.dot_dimension_numbers<[1], [0], [0], [1], [0, 0, 1, 1], [], []>} : vector<32x32xf32>, vector<32x32xf32>, vector<32x32xf32> -> vector<32x32xf32>
    %92 = arith.addf %88, %91 : vector<32x32xf32>
    %c28_i32_28 = arith.constant 28 : i32
    %93 = tpu.dynamic_rotate %77 by %c28_i32_28 dim 0 : vector<32x32xf32>, i32 -> vector<32x32xf32>
    %94 = vector.extract_strided_slice %78 {offsets = [128, 0], sizes = [32, 32], strides = [1, 1]} : vector<160x32xf32> to vector<32x32xf32>
    %cst_29 = arith.constant dense<0.000000e+00> : vector<32x32xf32>
    %95 = tpu.matmul %93, %94, %cst_29 {dimension_numbers = #tpu.dot_dimension_numbers<[1], [0], [0], [1], [0, 0, 1, 1], [], []>} : vector<32x32xf32>, vector<32x32xf32>, vector<32x32xf32> -> vector<32x32xf32>
    %96 = arith.addf %92, %95 : vector<32x32xf32>
    %97 = vector.broadcast %4 : vector<1x32xf32> to vector<32x32xf32>
    %98 = arith.addf %96, %97 : vector<32x32xf32>
    %cst_30 = arith.constant 0.000000e+00 : f32
    %99 = vector.broadcast %cst_30 : f32 to vector<32x32xf32>
    %100 = arith.maximumf %98, %99 : vector<32x32xf32>
    %101 = tpu.iota {dimensions = array<i32: 0>} : vector<2x32xi32>
    %102 = tpu.iota {dimensions = array<i32: 1>} : vector<2x32xi32>
    %c16_i32 = arith.constant 16 : i32
    %103 = vector.broadcast %c16_i32 : i32 to vector<2x32xi32>
    %104 = arith.muli %101, %103 : vector<2x32xi32>
    %105 = arith.cmpi sge, %102, %104 : vector<2x32xi32>
    %c16_i32_31 = arith.constant 16 : i32
    %106 = vector.broadcast %c16_i32_31 : i32 to vector<2x32xi32>
    %107 = arith.muli %101, %106 : vector<2x32xi32>
    %c10_i32 = arith.constant 10 : i32
    %108 = vector.broadcast %c10_i32 : i32 to vector<2x32xi32>
    %109 = arith.addi %107, %108 : vector<2x32xi32>
    %110 = arith.cmpi slt, %102, %109 : vector<2x32xi32>
    %111 = arith.andi %105, %110 : vector<2x32xi1>
    %cst_32 = arith.constant 1.000000e-01 : f32
    %cst_33 = arith.constant 0.000000e+00 : f32
    %112 = vector.broadcast %cst_32 : f32 to vector<2x32xf32>
    %113 = vector.broadcast %cst_33 : f32 to vector<2x32xf32>
    %114 = arith.select %111, %112, %113 : vector<2x32xi1>, vector<2x32xf32>
    %cst_34 = arith.constant dense<0.000000e+00> : vector<32xf32>
    %115 = vector.multi_reduction <add>, %114, %cst_34 [0] : vector<2x32xf32> to vector<32xf32>
    %116 = vector.shape_cast %115 : vector<32xf32> to vector<1x32xf32>
    %117 = tpu.concatenate %114, %116 in 0 : vector<2x32xf32>, vector<1x32xf32> -> vector<3x32xf32>
    %118 = arith.mulf %100, %100 : vector<32x32xf32>
    %119 = tpu.concatenate %100, %118 in 1 : vector<32x32xf32>, vector<32x32xf32> -> vector<32x64xf32>
    %cst_35 = arith.constant dense<0.000000e+00> : vector<3x64xf32>
    %120 = tpu.matmul %117, %119, %cst_35 {dimension_numbers = #tpu.dot_dimension_numbers<[1], [0], [0], [1], [0, 0, 1, 1], [], []>} : vector<3x32xf32>, vector<32x64xf32>, vector<3x64xf32> -> vector<3x64xf32>
    %121 = vector.extract_strided_slice %120 {offsets = [0, 0], sizes = [2, 32], strides = [1, 1]} : vector<3x64xf32> to vector<2x32xf32>
    %122 = vector.extract_strided_slice %120 {offsets = [2, 0], sizes = [1, 32], strides = [1, 1]} : vector<3x64xf32> to vector<1x32xf32>
    %cst_36 = arith.constant 5.000000e-01 : f32
    %123 = vector.broadcast %cst_36 : f32 to vector<1x32xf32>
    %124 = arith.mulf %122, %123 : vector<1x32xf32>
    %125 = vector.extract_strided_slice %120 {offsets = [2, 32], sizes = [1, 32], strides = [1, 1]} : vector<3x64xf32> to vector<1x32xf32>
    %cst_37 = arith.constant 5.000000e-01 : f32
    %126 = vector.broadcast %cst_37 : f32 to vector<1x32xf32>
    %127 = arith.mulf %125, %126 : vector<1x32xf32>
    %128 = arith.mulf %124, %124 : vector<1x32xf32>
    %129 = arith.subf %127, %128 : vector<1x32xf32>
    %130 = vector.broadcast %124 : vector<1x32xf32> to vector<2x32xf32>
    %131 = arith.subf %121, %130 : vector<2x32xf32>
    %cst_38 = arith.constant 9.99999974E-6 : f32
    %132 = vector.broadcast %cst_38 : f32 to vector<1x32xf32>
    %133 = arith.addf %129, %132 : vector<1x32xf32>
    %134 = math.rsqrt %133 : vector<1x32xf32>
    %135 = vector.broadcast %134 : vector<1x32xf32> to vector<2x32xf32>
    %136 = arith.mulf %131, %135 : vector<2x32xf32>
    %137 = vector.broadcast %5 : vector<1x32xf32> to vector<2x32xf32>
    %138 = arith.mulf %136, %137 : vector<2x32xf32>
    %139 = vector.broadcast %6 : vector<1x32xf32> to vector<2x32xf32>
    %140 = arith.addf %138, %139 : vector<2x32xf32>
    %c0_39 = arith.constant 0 : index
    %c0_40 = arith.constant 0 : index
    %141 = vector.load %arg3[%c0_39, %c0_40] : memref<32x32xf32, #tpu.memory_space<vmem>>, vector<32x32xf32>
    %cst_41 = arith.constant dense<0.000000e+00> : vector<2x32xf32>
    %142 = tpu.matmul %140, %141, %cst_41 {dimension_numbers = #tpu.dot_dimension_numbers<[1], [0], [0], [1], [0, 0, 1, 1], [], []>} : vector<2x32xf32>, vector<32x32xf32>, vector<2x32xf32> -> vector<2x32xf32>
    %143 = vector.broadcast %7 : vector<1x32xf32> to vector<2x32xf32>
    %144 = arith.addf %142, %143 : vector<2x32xf32>
    %c0_42 = arith.constant 0 : index
    %c0_43 = arith.constant 0 : index
    %145 = vector.load %arg5[%c0_42, %c0_43] : memref<2x32xf32, #tpu.memory_space<vmem>>, vector<2x32xf32>
    tpu.vector_store %arg5[%c0_42, %c0_43], %144 {strides = array<i32>} : memref<2x32xf32, #tpu.memory_space<vmem>>, vector<2x32xf32>,
    return
  }
}

</mosaic_0001>

<llo_original>
// kernel: cnn_block_forward.1
$region0: #{cnn_block_forward.1}
  #allocation0 [shape = 'u32[]', space=smem, size = 0x4, offset = 0x4, fixed_abs, tag = 'smem constant byte address 0x4 - core index']
  #allocation1 [shape = 'u32[144,128]{1,0:T(1,128)}', space=vmem, size = 0x12000, scoped, tag = 'internal scratch']
  #allocation2 [shape = 'f32[64,32]{1,0:T(8,128)}', space=vmem, size = 0x8000, scoped, tag = 'scratch operand']
  %s0 = inlined_call_operand.vmem [shape: f32[64,4], index: 0, kind: input, shape index: {}]
  %s1 = inlined_call_operand.vmem [shape: f32[20,32], index: 1, kind: input, shape index: {}]
  %s2 = inlined_call_operand.vmem [shape: f32[160,32], index: 2, kind: input, shape index: {}]
  %s3 = inlined_call_operand.hbm [shape: f32[32,32], index: 3, kind: input, shape index: {}]
  %s4 = inlined_call_operand.vmem [shape: f32[8,32], index: 4, kind: input, shape index: {}]
  %s5 = inlined_call_operand.hbm [shape: f32[2,32], index: 5, kind: output, shape index: {}]
  %s6 = sld [smem:[#allocation0]]
  $region34: #{cnn_block_forward.1} parent=0
    _
  %s8 = ssub.s32 1, %s6
  %s9 = scalar_select 0, %s8, %s6
  $region1: #{cnn_block_forward.1} parent=0
    #allocation3 [shape = 'u8[16384]{0}', space=vmem, size = 0x4000, scoped, tag = 'input window, operand 3, single buffered']
    #allocation4 [shape = 's32[1]{0}', space=sflag, size = 0x4, scoped, tag = 'scoped memory for cnn_block_forward.1']
    #allocation5 [shape = 's32[1]{0}', space=sflag, size = 0x4, scoped, tag = 'scoped memory for cnn_block_forward.1']
    #allocation6 [shape = 'u8[1024]{0}', space=vmem, size = 0x400, scoped, tag = 'output window, operand 0, single buffered']
    %10 = vsyncpa [#allocation4], 0
    %11 = vsyncpa [#allocation5], 0
    // Predicated region
    $region2: #{cnn_block_forward.1} parent=1 // pred_check
      _
    $region3: #{cnn_block_forward.1} parent=1 // pred_check_branch
      %13 = sbr.rel (0) target = $region5
    $region4: #{cnn_block_forward.1} parent=1 // pred_region
      _
    $region5: #{cnn_block_forward.1} parent=1 // pred_fallthru
      _
    // Predicated region
    $region6: #{cnn_block_forward.1} parent=1 // pred_check
      _
    $region7: #{cnn_block_forward.1} parent=1 // pred_check_branch
      %15 = sbr.rel (0) target = $region9
    $region8: #{cnn_block_forward.1} parent=1 // pred_region
      _
    $region9: #{cnn_block_forward.1} parent=1 // pred_fallthru
      _
    // Predicated region
    $region10: #{cnn_block_forward.1} parent=1 // pred_check
      _
    $region11: #{cnn_block_forward.1} parent=1 // pred_check_branch
      %17 = sbr.rel (0) target = $region13
    $region12: #{cnn_block_forward.1} parent=1 // pred_region
      _
    $region13: #{cnn_block_forward.1} parent=1 // pred_fallthru
      _
    // Predicated region
    $region14: #{cnn_block_forward.1} parent=1 // pred_check
      _
    $region15: #{cnn_block_forward.1} parent=1 // pred_check_branch
      %19 = sbr.rel (0) target = $region17
    $region16: #{cnn_block_forward.1} parent=1 // pred_region
      %s21 = ssub.s32 512, 512
      %22 = vsyncadd [#allocation4], %s21
      %s23 = sshll.u32 [#allocation3], 4
      %s24 = int_to_ptr.vmem [resolvable:$true] %s23
      %29 = dma.hbm_to_vmem [thread:$0]  %s3, 512, %s24, [#allocation4], 128, 128, 8
    $region17: #{cnn_block_forward.1} parent=1 // pred_fallthru
      _
    // Predicated region
    $region18: #{cnn_block_forward.1} parent=1 // pred_check
      _
    $region19: #{cnn_block_forward.1} parent=1 // pred_check_branch
      %31 = sbr.rel (0) target = $region21
    $region20: #{cnn_block_forward.1} parent=1 // pred_region
      _
    $region21: #{cnn_block_forward.1} parent=1 // pred_fallthru
      _
    // Predicated region
    $region22: #{cnn_block_forward.1} parent=1 // pred_check
      _
    $region23: #{cnn_block_forward.1} parent=1 // pred_check_branch
      %33 = sbr.rel (0) target = $region25
    $region24: #{cnn_block_forward.1} parent=1 // pred_region
      %34 = dma.done [#allocation4], 512
    $region25: #{cnn_block_forward.1} parent=1 // pred_fallthru
      _
    %v35 = vld [vmem:[%s4] sm:$0xff]
    %v36 = vld [vmem:[%s0] sm:$0xff]
    %v37 = vld [vmem:[%s0 + $0x8] sm:$0xff]
    %v38 = vld [vmem:[%s0 + $0x10] sm:$0xff]
    %v39 = vld [vmem:[%s0 + $0x18] sm:$0xff]
    %v40 = vld [vmem:[%s0 + $0x20] sm:$0xff]
    %v41 = vld [vmem:[%s0 + $0x28] sm:$0xff]
    %v42 = vld [vmem:[%s0 + $0x30] sm:$0xff]
    %v43 = vld [vmem:[%s0 + $0x38] sm:$0xff]
    %v44 = vld [vmem:[%s1] sm:$0xff]
    %v45 = vld [vmem:[%s1 + $0x8] sm:$0xff]
    %v46 = vld [vmem:[%s1 + $0x10] sm:$0xf]
    %v47 = vrot.slane %v36, 1
    %v48 = vrot.slane %v37, 1
    %v49 = vrot.slane %v38, 1
    %v50 = vrot.slane %v39, 1
    %v51 = vrot.slane %v40, 1
    %v52 = vrot.slane %v41, 1
    %v53 = vrot.slane %v42, 1
    %v54 = vrot.slane %v43, 1
    %v55 = vlaneseq
    %v56 = vshrl.u32 %v55, 7
    %vm57 = vcmp.lt.s32.totalorder %v56, 7
    %v58 = vsel %vm57, %v53, %v54
    %v59 = vsel %vm57, %v52, %v53
    %v60 = vsel %vm57, %v51, %v52
    %v61 = vsel %vm57, %v50, %v51
    %v62 = vsel %vm57, %v49, %v50
    %v63 = vsel %vm57, %v48, %v49
    %v64 = vsel %vm57, %v47, %v48
    %v65 = vsel %vm57, %v54, %v47
    %v67 = vrot.slane %v44, 4
    %vm68 = vcmask 31744
    %v70 = vsel %vm68, %v64, 0
    %v73 = vsel %vm68, %v63, 0
    %v76 = vsel %vm68, %v62, 0
    %v79 = vsel %vm68, %v61, 0
    %v82 = vsel %vm68, %v60, 0
    %v85 = vsel %vm68, %v59, 0
    %v88 = vsel %vm68, %v58, 0
    %v91 = vsel %vm68, %v65, 0
    %vm93 = vcmask 1043456
    %v94 = vsel %vm93, %v67, 0
    %96 = vmatprep.subr.mxu0 0.0
    %97 = vmatpush1.msra.mxu0 %v94
    %98 = vmatprep.subr.mxu0 0.0
    %99 = vmatpush1.msra.mxu0 0.0
    %100 = vmatprep.subr.mxu0 0.0
    %101 = vmatpush1.msra.mxu0 0.0
    %102 = vmatprep.subr.mxu0 0.0
    %103 = vmatpush1.msra.mxu0 0.0
    %104 = vmatprep.subr.mxu0 0.0
    %105 = vmatpush1.msra.mxu0 0.0
    %106 = vmatprep.subr.mxu0 0.0
    %107 = vmatpush1.msra.mxu0 0.0
    %108 = vmatprep.subr.mxu0 0.0
    %109 = vmatpush1.msra.mxu0 0.0
    %110 = vmatprep.subr.mxu0 0.0
    %111 = vmatpush1.msra.mxu0 0.0
    %112 = vmatprep.subr.mxu0 0.0
    %113 = vmatpush1.msra.mxu0 0.0
    %114 = vmatprep.subr.mxu0 0.0
    %115 = vmatpush1.msra.mxu0 0.0
    %116 = vmatprep.subr.mxu0 0.0
    %117 = vmatpush1.msra.mxu0 0.0
    %118 = vmatprep.subr.mxu0 0.0
    %119 = vmatpush1.msra.mxu0 0.0
    %120 = vmatprep.subr.mxu0 0.0
    %121 = vmatpush1.msra.mxu0 0.0
    %122 = vmatprep.subr.mxu0 0.0
    %123 = vmatpush1.msra.mxu0 0.0
    %124 = vmatprep.subr.mxu0 0.0
    %125 = vmatpush1.msra.mxu0 0.0
    %126 = vmatprep.subr.mxu0 0.0
    %127 = vmatpush1.msra.mxu0 0.0
    %128 = vmatprep.subr.mxu0 0.0
    %129 = vmatpush1.msra.mxu0 0.0
    %130 = vmatprep.subr.mxu0 0.0
    %131 = vmatpush1.msra.mxu0 0.0
    %132 = vmatprep.subr.mxu0 0.0
    %133 = vmatpush1.msra.mxu0 0.0
    %134 = vmatprep.subr.mxu0 0.0
    %135 = vmatpush1.msra.mxu0 0.0
    %136 = vmatprep.subr.mxu0 0.0
    %137 = vmatpush1.msra.mxu0 0.0
    %138 = vmatprep.subr.mxu0 0.0
    %139 = vmatpush1.msra.mxu0 0.0
    %140 = vmatprep.subr.mxu0 0.0
    %141 = vmatpush1.msra.mxu0 0.0
    %142 = vmatprep.subr.mxu0 0.0
    %143 = vmatpush1.msra.mxu0 0.0
    %144 = vmatprep.subr.mxu0 0.0
    %145 = vmatpush1.msra.mxu0 0.0
    %146 = vmatprep.subr.mxu0 0.0
    %147 = vmatpush1.msra.mxu0 0.0
    %148 = vmatprep.subr.mxu0 0.0
    %149 = vmatpush1.msra.mxu0 0.0
    %150 = vmatprep.subr.mxu0 0.0
    %151 = vmatpush1.msra.mxu0 0.0
    %152 = vmatprep.subr.mxu0 0.0
    %153 = vmatpush1.msra.mxu0 0.0
    %154 = vmatprep.subr.mxu0 0.0
    %155 = vmatpush1.msra.mxu0 0.0
    %156 = vmatprep.subr.mxu0 0.0
    %157 = vmatpush1.msra.mxu0 0.0
    %158 = vmatprep.subr.mxu0 0.0
    %159 = vmatpush1.msra.mxu0 0.0
    %160 = vmatprep.mubr.f32.mxu0 0.0
    %161 = vmatmul.mubr.f32.gmra.mrb[0].mxu0 %v70
    %v162 = vpop.f32.mrb[0].mxu0
    %v163 = vadd.f32 0.0, %v162
    %v164 = vpop.f32.mrb[0].mxu0
    %165 = vmatprep.mubr.f32.mxu0 0.0
    %166 = vmatmul.mubr.f32.gmra.mrb[0].mxu0 %v73
    %v167 = vpop.f32.mrb[0].mxu0
    %v168 = vadd.f32 0.0, %v167
    %v169 = vpop.f32.mrb[0].mxu0
    %170 = vmatprep.mubr.f32.mxu0 0.0
    %171 = vmatmul.mubr.f32.gmra.mrb[0].mxu0 %v76
    %v172 = vpop.f32.mrb[0].mxu0
    %v173 = vadd.f32 0.0, %v172
    %v174 = vpop.f32.mrb[0].mxu0
    %175 = vmatprep.mubr.f32.mxu0 0.0
    %176 = vmatmul.mubr.f32.gmra.mrb[0].mxu0 %v79
    %v177 = vpop.f32.mrb[0].mxu0
    %v178 = vadd.f32 0.0, %v177
    %v179 = vpop.f32.mrb[0].mxu0
    %180 = vmatprep.mubr.f32.mxu0 0.0
    %181 = vmatmul.mubr.f32.gmra.mrb[0].mxu0 %v82
    %v182 = vpop.f32.mrb[0].mxu0
    %v183 = vadd.f32 0.0, %v182
    %v184 = vpop.f32.mrb[0].mxu0
    %185 = vmatprep.mubr.f32.mxu0 0.0
    %186 = vmatmul.mubr.f32.gmra.mrb[0].mxu0 %v85
    %v187 = vpop.f32.mrb[0].mxu0
    %v188 = vadd.f32 0.0, %v187
    %v189 = vpop.f32.mrb[0].mxu0
    %190 = vmatprep.mubr.f32.mxu0 0.0
    %191 = vmatmul.mubr.f32.gmra.mrb[0].mxu0 %v88
    %v192 = vpop.f32.mrb[0].mxu0
    %v193 = vadd.f32 0.0, %v192
    %v194 = vpop.f32.mrb[0].mxu0
    %195 = vmatprep.mubr.f32.mxu0 0.0
    %196 = vmatmul.mubr.f32.gmra.mrb[0].mxu0 %v91
    %v197 = vpop.f32.mrb[0].mxu0
    %v198 = vadd.f32 0.0, %v197
    %v199 = vpop.f32.mrb[0].mxu0
    %200 = vdwg.mxu0
    %v202 = vsel %vm68, %v36, 0
    %v205 = vsel %vm68, %v37, 0
    %v208 = vsel %vm68, %v38, 0
    %v211 = vsel %vm68, %v39, 0
    %v214 = vsel %vm68, %v40, 0
    %v217 = vsel %vm68, %v41, 0
    %v220 = vsel %vm68, %v42, 0
    %v223 = vsel %vm68, %v43, 0
    %v225 = vsel %vm93, %v44, 0
    %227 = vmatprep.subr.mxu0 0.0
    %228 = vmatpush1.msra.mxu0 %v225
    %229 = vmatprep.subr.mxu0 0.0
    %230 = vmatpush1.msra.mxu0 0.0
    %231 = vmatprep.subr.mxu0 0.0
    %232 = vmatpush1.msra.mxu0 0.0
    %233 = vmatprep.subr.mxu0 0.0
    %234 = vmatpush1.msra.mxu0 0.0
    %235 = vmatprep.subr.mxu0 0.0
    %236 = vmatpush1.msra.mxu0 0.0
    %237 = vmatprep.subr.mxu0 0.0
    %238 = vmatpush1.msra.mxu0 0.0
    %239 = vmatprep.subr.mxu0 0.0
    %240 = vmatpush1.msra.mxu0 0.0
    %241 = vmatprep.subr.mxu0 0.0
    %242 = vmatpush1.msra.mxu0 0.0
    %243 = vmatprep.subr.mxu0 0.0
    %244 = vmatpush1.msra.mxu0 0.0
    %245 = vmatprep.subr.mxu0 0.0
    %246 = vmatpush1.msra.mxu0 0.0
    %247 = vmatprep.subr.mxu0 0.0
    %248 = vmatpush1.msra.mxu0 0.0
    %249 = vmatprep.subr.mxu0 0.0
    %250 = vmatpush1.msra.mxu0 0.0
    %251 = vmatprep.subr.mxu0 0.0
    %252 = vmatpush1.msra.mxu0 0.0
    %253 = vmatprep.subr.mxu0 0.0
    %254 = vmatpush1.msra.mxu0 0.0
    %255 = vmatprep.subr.mxu0 0.0
    %256 = vmatpush1.msra.mxu0 0.0
    %257 = vmatprep.subr.mxu0 0.0
    %258 = vmatpush1.msra.mxu0 0.0
    %259 = vmatprep.subr.mxu0 0.0
    %260 = vmatpush1.msra.mxu0 0.0
    %261 = vmatprep.subr.mxu0 0.0
    %262 = vmatpush1.msra.mxu0 0.0
    %263 = vmatprep.subr.mxu0 0.0
    %264 = vmatpush1.msra.mxu0 0.0
    %265 = vmatprep.subr.mxu0 0.0
    %266 = vmatpush1.msra.mxu0 0.0
    %267 = vmatprep.subr.mxu0 0.0
    %268 = vmatpush1.msra.mxu0 0.0
    %269 = vmatprep.subr.mxu0 0.0
    %270 = vmatpush1.msra.mxu0 0.0
    %271 = vmatprep.subr.mxu0 0.0
    %272 = vmatpush1.msra.mxu0 0.0
    %273 = vmatprep.subr.mxu0 0.0
    %274 = vmatpush1.msra.mxu0 0.0
    %275 = vmatprep.subr.mxu0 0.0
    %276 = vmatpush1.msra.mxu0 0.0
    %277 = vmatprep.subr.mxu0 0.0
    %278 = vmatpush1.msra.mxu0 0.0
    %279 = vmatprep.subr.mxu0 0.0
    %280 = vmatpush1.msra.mxu0 0.0
    %281 = vmatprep.subr.mxu0 0.0
    %282 = vmatpush1.msra.mxu0 0.0
    %283 = vmatprep.subr.mxu0 0.0
    %284 = vmatpush1.msra.mxu0 0.0
    %285 = vmatprep.subr.mxu0 0.0
    %286 = vmatpush1.msra.mxu0 0.0
    %287 = vmatprep.subr.mxu0 0.0
    %288 = vmatpush1.msra.mxu0 0.0
    %289 = vmatprep.subr.mxu0 0.0
    %290 = vmatpush1.msra.mxu0 0.0
    %291 = vmatprep.mubr.f32.mxu0 0.0
    %292 = vmatmul.mubr.f32.gmra.mrb[0].mxu0 %v202
    %v293 = vpop.f32.mrb[0].mxu0
    %v294 = vadd.f32 %v163, %v293
    %v295 = vpop.f32.mrb[0].mxu0
    %296 = vmatprep.mubr.f32.mxu0 0.0
    %297 = vmatmul.mubr.f32.gmra.mrb[0].mxu0 %v205
    %v298 = vpop.f32.mrb[0].mxu0
    %v299 = vadd.f32 %v168, %v298
    %v300 = vpop.f32.mrb[0].mxu0
    %301 = vmatprep.mubr.f32.mxu0 0.0
    %302 = vmatmul.mubr.f32.gmra.mrb[0].mxu0 %v208
    %v303 = vpop.f32.mrb[0].mxu0
    %v304 = vadd.f32 %v173, %v303
    %v305 = vpop.f32.mrb[0].mxu0
    %306 = vmatprep.mubr.f32.mxu0 0.0
    %307 = vmatmul.mubr.f32.gmra.mrb[0].mxu0 %v211
    %v308 = vpop.f32.mrb[0].mxu0
    %v309 = vadd.f32 %v178, %v308
    %v310 = vpop.f32.mrb[0].mxu0
    %311 = vmatprep.mubr.f32.mxu0 0.0
    %312 = vmatmul.mubr.f32.gmra.mrb[0].mxu0 %v214
    %v313 = vpop.f32.mrb[0].mxu0
    %v314 = vadd.f32 %v183, %v313
    %v315 = vpop.f32.mrb[0].mxu0
    %316 = vmatprep.mubr.f32.mxu0 0.0
    %317 = vmatmul.mubr.f32.gmra.mrb[0].mxu0 %v217
    %v318 = vpop.f32.mrb[0].mxu0
    %v319 = vadd.f32 %v188, %v318
    %v320 = vpop.f32.mrb[0].mxu0
    %321 = vmatprep.mubr.f32.mxu0 0.0
    %322 = vmatmul.mubr.f32.gmra.mrb[0].mxu0 %v220
    %v323 = vpop.f32.mrb[0].mxu0
    %v324 = vadd.f32 %v193, %v323
    %v325 = vpop.f32.mrb[0].mxu0
    %326 = vmatprep.mubr.f32.mxu0 0.0
    %327 = vmatmul.mubr.f32.gmra.mrb[0].mxu0 %v223
    %v328 = vpop.f32.mrb[0].mxu0
    %v329 = vadd.f32 %v198, %v328
    %v330 = vpop.f32.mrb[0].mxu0
    %331 = vdwg.mxu0
    %v332 = vrot.slane %v36, 2
    %v333 = vrot.slane %v37, 2
    %v334 = vrot.slane %v38, 2
    %v335 = vrot.slane %v39, 2
    %v336 = vrot.slane %v40, 2
    %v337 = vrot.slane %v41, 2
    %v338 = vrot.slane %v42, 2
    %v339 = vrot.slane %v43, 2
    %vm340 = vcmp.lt.s32.totalorder %v56, 6
    %v341 = vsel %vm340, %v338, %v339
    %v342 = vsel %vm340, %v337, %v338
    %v343 = vsel %vm340, %v336, %v337
    %v344 = vsel %vm340, %v335, %v336
    %v345 = vsel %vm340, %v334, %v335
    %v346 = vsel %vm340, %v333, %v334
    %v347 = vsel %vm340, %v332, %v333
    %v348 = vsel %vm340, %v339, %v332
    %v350 = vsel %vm68, %v347, 0
    %v353 = vsel %vm68, %v346, 0
    %v356 = vsel %vm68, %v345, 0
    %v359 = vsel %vm68, %v344, 0
    %v362 = vsel %vm68, %v343, 0
    %v365 = vsel %vm68, %v342, 0
    %v368 = vsel %vm68, %v341, 0
    %v371 = vsel %vm68, %v348, 0
    %v374 = vsel %vm93, %v45, 0
    %376 = vmatprep.subr.mxu0 0.0
    %377 = vmatpush1.msra.mxu0 %v374
    %378 = vmatprep.subr.mxu0 0.0
    %379 = vmatpush1.msra.mxu0 0.0
    %380 = vmatprep.subr.mxu0 0.0
    %381 = vmatpush1.msra.mxu0 0.0
    %382 = vmatprep.subr.mxu0 0.0
    %383 = vmatpush1.msra.mxu0 0.0
    %384 = vmatprep.subr.mxu0 0.0
    %385 = vmatpush1.msra.mxu0 0.0
    %386 = vmatprep.subr.mxu0 0.0
    %387 = vmatpush1.msra.mxu0 0.0
    %388 = vmatprep.subr.mxu0 0.0
    %389 = vmatpush1.msra.mxu0 0.0
    %390 = vmatprep.subr.mxu0 0.0
    %391 = vmatpush1.msra.mxu0 0.0
    %392 = vmatprep.subr.mxu0 0.0
    %393 = vmatpush1.msra.mxu0 0.0
    %394 = vmatprep.subr.mxu0 0.0
    %395 = vmatpush1.msra.mxu0 0.0
    %396 = vmatprep.subr.mxu0 0.0
    %397 = vmatpush1.msra.mxu0 0.0
    %398 = vmatprep.subr.mxu0 0.0
    %399 = vmatpush1.msra.mxu0 0.0
    %400 = vmatprep.subr.mxu0 0.0
    %401 = vmatpush1.msra.mxu0 0.0
    %402 = vmatprep.subr.mxu0 0.0
    %403 = vmatpush1.msra.mxu0 0.0
    %404 = vmatprep.subr.mxu0 0.0
    %405 = vmatpush1.msra.mxu0 0.0
    %406 = vmatprep.subr.mxu0 0.0
    %407 = vmatpush1.msra.mxu0 0.0
    %408 = vmatprep.subr.mxu0 0.0
    %409 = vmatpush1.msra.mxu0 0.0
    %410 = vmatprep.subr.mxu0 0.0
    %411 = vmatpush1.msra.mxu0 0.0
    %412 = vmatprep.subr.mxu0 0.0
    %413 = vmatpush1.msra.mxu0 0.0
    %414 = vmatprep.subr.mxu0 0.0
    %415 = vmatpush1.msra.mxu0 0.0
    %416 = vmatprep.subr.mxu0 0.0
    %417 = vmatpush1.msra.mxu0 0.0
    %418 = vmatprep.subr.mxu0 0.0
    %419 = vmatpush1.msra.mxu0 0.0
    %420 = vmatprep.subr.mxu0 0.0
    %421 = vmatpush1.msra.mxu0 0.0
    %422 = vmatprep.subr.mxu0 0.0
    %423 = vmatpush1.msra.mxu0 0.0
    %424 = vmatprep.subr.mxu0 0.0
    %425 = vmatpush1.msra.mxu0 0.0
    %426 = vmatprep.subr.mxu0 0.0
    %427 = vmatpush1.msra.mxu0 0.0
    %428 = vmatprep.subr.mxu0 0.0
    %429 = vmatpush1.msra.mxu0 0.0
    %430 = vmatprep.subr.mxu0 0.0
    %431 = vmatpush1.msra.mxu0 0.0
    %432 = vmatprep.subr.mxu0 0.0
    %433 = vmatpush1.msra.mxu0 0.0
    %434 = vmatprep.subr.mxu0 0.0
    %435 = vmatpush1.msra.mxu0 0.0
    %436 = vmatprep.subr.mxu0 0.0
    %437 = vmatpush1.msra.mxu0 0.0
    %438 = vmatprep.subr.mxu0 0.0
    %439 = vmatpush1.msra.mxu0 0.0
    %440 = vmatprep.mubr.f32.mxu0 0.0
    %441 = vmatmul.mubr.f32.gmra.mrb[0].mxu0 %v350
    %v442 = vpop.f32.mrb[0].mxu0
    %v443 = vadd.f32 0.0, %v442
    %v444 = vpop.f32.mrb[0].mxu0
    %445 = vmatprep.mubr.f32.mxu0 0.0
    %446 = vmatmul.mubr.f32.gmra.mrb[0].mxu0 %v353
    %v447 = vpop.f32.mrb[0].mxu0
    %v448 = vadd.f32 0.0, %v447
    %v449 = vpop.f32.mrb[0].mxu0
    %450 = vmatprep.mubr.f32.mxu0 0.0
    %451 = vmatmul.mubr.f32.gmra.mrb[0].mxu0 %v356
    %v452 = vpop.f32.mrb[0].mxu0
    %v453 = vadd.f32 0.0, %v452
    %v454 = vpop.f32.mrb[0].mxu0
    %455 = vmatprep.mubr.f32.mxu0 0.0
    %456 = vmatmul.mubr.f32.gmra.mrb[0].mxu0 %v359
    %v457 = vpop.f32.mrb[0].mxu0
    %v458 = vadd.f32 0.0, %v457
    %v459 = vpop.f32.mrb[0].mxu0
    %460 = vmatprep.mubr.f32.mxu0 0.0
    %461 = vmatmul.mubr.f32.gmra.mrb[0].mxu0 %v362
    %v462 = vpop.f32.mrb[0].mxu0
    %v463 = vadd.f32 0.0, %v462
    %v464 = vpop.f32.mrb[0].mxu0
    %465 = vmatprep.mubr.f32.mxu0 0.0
    %466 = vmatmul.mubr.f32.gmra.mrb[0].mxu0 %v365
    %v467 = vpop.f32.mrb[0].mxu0
    %v468 = vadd.f32 0.0, %v467
    %v469 = vpop.f32.mrb[0].mxu0
    %470 = vmatprep.mubr.f32.mxu0 0.0
    %471 = vmatmul.mubr.f32.gmra.mrb[0].mxu0 %v368
    %v472 = vpop.f32.mrb[0].mxu0
    %v473 = vadd.f32 0.0, %v472
    %v474 = vpop.f32.mrb[0].mxu0
    %475 = vmatprep.mubr.f32.mxu0 0.0
    %476 = vmatmul.mubr.f32.gmra.mrb[0].mxu0 %v371
    %v477 = vpop.f32.mrb[0].mxu0
    %v478 = vadd.f32 0.0, %v477
    %v479 = vpop.f32.mrb[0].mxu0
    %480 = vdwg.mxu0
    %v481 = vadd.f32 %v294, %v443
    %v482 = vadd.f32 %v299, %v448
    %v483 = vadd.f32 %v304, %v453
    %v484 = vadd.f32 %v309, %v458
    %v485 = vadd.f32 %v314, %v463
    %v486 = vadd.f32 %v319, %v468
    %v487 = vadd.f32 %v324, %v473
    %v488 = vadd.f32 %v329, %v478
    %v489 = vrot.slane %v36, 3
    %v490 = vrot.slane %v37, 3
    %v491 = vrot.slane %v38, 3
    %v492 = vrot.slane %v39, 3
    %v493 = vrot.slane %v40, 3
    %v494 = vrot.slane %v41, 3
    %v495 = vrot.slane %v42, 3
    %v496 = vrot.slane %v43, 3
    %vm497 = vcmp.lt.s32.totalorder %v56, 5
    %v498 = vsel %vm497, %v495, %v496
    %v499 = vsel %vm497, %v494, %v495
    %v500 = vsel %vm497, %v493, %v494
    %v501 = vsel %vm497, %v492, %v493
    %v502 = vsel %vm497, %v491, %v492
    %v503 = vsel %vm497, %v490, %v491
    %v504 = vsel %vm497, %v489, %v490
    %v505 = vsel %vm497, %v496, %v489
    %v506 = vrot.slane %v45, 4
    %v508 = vsel %vm68, %v504, 0
    %v511 = vsel %vm68, %v503, 0
    %v514 = vsel %vm68, %v502, 0
    %v517 = vsel %vm68, %v501, 0
    %v520 = vsel %vm68, %v500, 0
    %v523 = vsel %vm68, %v499, 0
    %v526 = vsel %vm68, %v498, 0
    %v529 = vsel %vm68, %v505, 0
    %v531 = vsel %vm93, %v506, 0
    %533 = vmatprep.subr.mxu0 0.0
    %534 = vmatpush1.msra.mxu0 %v531
    %535 = vmatprep.subr.mxu0 0.0
    %536 = vmatpush1.msra.mxu0 0.0
    %537 = vmatprep.subr.mxu0 0.0
    %538 = vmatpush1.msra.mxu0 0.0
    %539 = vmatprep.subr.mxu0 0.0
    %540 = vmatpush1.msra.mxu0 0.0
    %541 = vmatprep.subr.mxu0 0.0
    %542 = vmatpush1.msra.mxu0 0.0
    %543 = vmatprep.subr.mxu0 0.0
    %544 = vmatpush1.msra.mxu0 0.0
    %545 = vmatprep.subr.mxu0 0.0
    %546 = vmatpush1.msra.mxu0 0.0
    %547 = vmatprep.subr.mxu0 0.0
    %548 = vmatpush1.msra.mxu0 0.0
    %549 = vmatprep.subr.mxu0 0.0
    %550 = vmatpush1.msra.mxu0 0.0
    %551 = vmatprep.subr.mxu0 0.0
    %552 = vmatpush1.msra.mxu0 0.0
    %553 = vmatprep.subr.mxu0 0.0
    %554 = vmatpush1.msra.mxu0 0.0
    %555 = vmatprep.subr.mxu0 0.0
    %556 = vmatpush1.msra.mxu0 0.0
    %557 = vmatprep.subr.mxu0 0.0
    %558 = vmatpush1.msra.mxu0 0.0
    %559 = vmatprep.subr.mxu0 0.0
    %560 = vmatpush1.msra.mxu0 0.0
    %561 = vmatprep.subr.mxu0 0.0
    %562 = vmatpush1.msra.mxu0 0.0
    %563 = vmatprep.subr.mxu0 0.0
    %564 = vmatpush1.msra.mxu0 0.0
    %565 = vmatprep.subr.mxu0 0.0
    %566 = vmatpush1.msra.mxu0 0.0
    %567 = vmatprep.subr.mxu0 0.0
    %568 = vmatpush1.msra.mxu0 0.0
    %569 = vmatprep.subr.mxu0 0.0
    %570 = vmatpush1.msra.mxu0 0.0
    %571 = vmatprep.subr.mxu0 0.0
    %572 = vmatpush1.msra.mxu0 0.0
    %573 = vmatprep.subr.mxu0 0.0
    %574 = vmatpush1.msra.mxu0 0.0
    %575 = vmatprep.subr.mxu0 0.0
    %576 = vmatpush1.msra.mxu0 0.0
    %577 = vmatprep.subr.mxu0 0.0
    %578 = vmatpush1.msra.mxu0 0.0
    %579 = vmatprep.subr.mxu0 0.0
    %580 = vmatpush1.msra.mxu0 0.0
    %581 = vmatprep.subr.mxu0 0.0
    %582 = vmatpush1.msra.mxu0 0.0
    %583 = vmatprep.subr.mxu0 0.0
    %584 = vmatpush1.msra.mxu0 0.0
    %585 = vmatprep.subr.mxu0 0.0
    %586 = vmatpush1.msra.mxu0 0.0
    %587 = vmatprep.subr.mxu0 0.0
    %588 = vmatpush1.msra.mxu0 0.0
    %589 = vmatprep.subr.mxu0 0.0
    %590 = vmatpush1.msra.mxu0 0.0
    %591 = vmatprep.subr.mxu0 0.0
    %592 = vmatpush1.msra.mxu0 0.0
    %593 = vmatprep.subr.mxu0 0.0
    %594 = vmatpush1.msra.mxu0 0.0
    %595 = vmatprep.subr.mxu0 0.0
    %596 = vmatpush1.msra.mxu0 0.0
    %597 = vmatprep.mubr.f32.mxu0 0.0
    %598 = vmatmul.mubr.f32.gmra.mrb[0].mxu0 %v508
    %v599 = vpop.f32.mrb[0].mxu0
    %v600 = vadd.f32 0.0, %v599
    %v601 = vpop.f32.mrb[0].mxu0
    %602 = vmatprep.mubr.f32.mxu0 0.0
    %603 = vmatmul.mubr.f32.gmra.mrb[0].mxu0 %v511
    %v604 = vpop.f32.mrb[0].mxu0
    %v605 = vadd.f32 0.0, %v604
    %v606 = vpop.f32.mrb[0].mxu0
    %607 = vmatprep.mubr.f32.mxu0 0.0
    %608 = vmatmul.mubr.f32.gmra.mrb[0].mxu0 %v514
    %v609 = vpop.f32.mrb[0].mxu0
    %v610 = vadd.f32 0.0, %v609
    %v611 = vpop.f32.mrb[0].mxu0
    %612 = vmatprep.mubr.f32.mxu0 0.0
    %613 = vmatmul.mubr.f32.gmra.mrb[0].mxu0 %v517
    %v614 = vpop.f32.mrb[0].mxu0
    %v615 = vadd.f32 0.0, %v614
    %v616 = vpop.f32.mrb[0].mxu0
    %617 = vmatprep.mubr.f32.mxu0 0.0
    %618 = vmatmul.mubr.f32.gmra.mrb[0].mxu0 %v520
    %v619 = vpop.f32.mrb[0].mxu0
    %v620 = vadd.f32 0.0, %v619
    %v621 = vpop.f32.mrb[0].mxu0
    %622 = vmatprep.mubr.f32.mxu0 0.0
    %623 = vmatmul.mubr.f32.gmra.mrb[0].mxu0 %v523
    %v624 = vpop.f32.mrb[0].mxu0
    %v625 = vadd.f32 0.0, %v624
    %v626 = vpop.f32.mrb[0].mxu0
    %627 = vmatprep.mubr.f32.mxu0 0.0
    %628 = vmatmul.mubr.f32.gmra.mrb[0].mxu0 %v526
    %v629 = vpop.f32.mrb[0].mxu0
    %v630 = vadd.f32 0.0, %v629
    %v631 = vpop.f32.mrb[0].mxu0
    %632 = vmatprep.mubr.f32.mxu0 0.0
    %633 = vmatmul.mubr.f32.gmra.mrb[0].mxu0 %v529
    %v634 = vpop.f32.mrb[0].mxu0
    %v635 = vadd.f32 0.0, %v634
    %v636 = vpop.f32.mrb[0].mxu0
    %637 = vdwg.mxu0
    %v638 = vadd.f32 %v481, %v600
    %v639 = vadd.f32 %v482, %v605
    %v640 = vadd.f32 %v483, %v610
    %v641 = vadd.f32 %v484, %v615
    %v642 = vadd.f32 %v485, %v620
    %v643 = vadd.f32 %v486, %v625
    %v644 = vadd.f32 %v487, %v630
    %v645 = vadd.f32 %v488, %v635
    %v646 = vrot.slane %v36, 4
    %v647 = vrot.slane %v37, 4
    %v648 = vrot.slane %v38, 4
    %v649 = vrot.slane %v39, 4
    %v650 = vrot.slane %v40, 4
    %v651 = vrot.slane %v41, 4
    %v652 = vrot.slane %v42, 4
    %v653 = vrot.slane %v43, 4
    %vm654 = vcmp.lt.s32.totalorder %v56, 4
    %v655 = vsel %vm654, %v652, %v653
    %v656 = vsel %vm654, %v651, %v652
    %v657 = vsel %vm654, %v650, %v651
    %v658 = vsel %vm654, %v649, %v650
    %v659 = vsel %vm654, %v648, %v649
    %v660 = vsel %vm654, %v647, %v648
    %v661 = vsel %vm654, %v646, %v647
    %v662 = vsel %vm654, %v653, %v646
    %v664 = vsel %vm68, %v661, 0
    %v667 = vsel %vm68, %v660, 0
    %v670 = vsel %vm68, %v659, 0
    %v673 = vsel %vm68, %v658, 0
    %v676 = vsel %vm68, %v657, 0
    %v679 = vsel %vm68, %v656, 0
    %v682 = vsel %vm68, %v655, 0
    %v685 = vsel %vm68, %v662, 0
    %v688 = vsel %vm93, %v46, 0
    %690 = vmatprep.subr.mxu0 0.0
    %691 = vmatpush1.msra.mxu0 %v688
    %692 = vmatprep.subr.mxu0 0.0
    %693 = vmatpush1.msra.mxu0 0.0
    %694 = vmatprep.subr.mxu0 0.0
    %695 = vmatpush1.msra.mxu0 0.0
    %696 = vmatprep.subr.mxu0 0.0
    %697 = vmatpush1.msra.mxu0 0.0
    %698 = vmatprep.subr.mxu0 0.0
    %699 = vmatpush1.msra.mxu0 0.0
    %700 = vmatprep.subr.mxu0 0.0
    %701 = vmatpush1.msra.mxu0 0.0
    %702 = vmatprep.subr.mxu0 0.0
    %703 = vmatpush1.msra.mxu0 0.0
    %704 = vmatprep.subr.mxu0 0.0
    %705 = vmatpush1.msra.mxu0 0.0
    %706 = vmatprep.subr.mxu0 0.0
    %707 = vmatpush1.msra.mxu0 0.0
    %708 = vmatprep.subr.mxu0 0.0
    %709 = vmatpush1.msra.mxu0 0.0
    %710 = vmatprep.subr.mxu0 0.0
    %711 = vmatpush1.msra.mxu0 0.0
    %712 = vmatprep.subr.mxu0 0.0
    %713 = vmatpush1.msra.mxu0 0.0
    %714 = vmatprep.subr.mxu0 0.0
    %715 = vmatpush1.msra.mxu0 0.0
    %716 = vmatprep.subr.mxu0 0.0
    %717 = vmatpush1.msra.mxu0 0.0
    %718 = vmatprep.subr.mxu0 0.0
    %719 = vmatpush1.msra.mxu0 0.0
    %720 = vmatprep.subr.mxu0 0.0
    %721 = vmatpush1.msra.mxu0 0.0
    %722 = vmatprep.subr.mxu0 0.0
    %723 = vmatpush1.msra.mxu0 0.0
    %724 = vmatprep.subr.mxu0 0.0
    %725 = vmatpush1.msra.mxu0 0.0
    %726 = vmatprep.subr.mxu0 0.0
    %727 = vmatpush1.msra.mxu0 0.0
    %728 = vmatprep.subr.mxu0 0.0
    %729 = vmatpush1.msra.mxu0 0.0
    %730 = vmatprep.subr.mxu0 0.0
    %731 = vmatpush1.msra.mxu0 0.0
    %732 = vmatprep.subr.mxu0 0.0
    %733 = vmatpush1.msra.mxu0 0.0
    %734 = vmatprep.subr.mxu0 0.0
    %735 = vmatpush1.msra.mxu0 0.0
    %736 = vmatprep.subr.mxu0 0.0
    %737 = vmatpush1.msra.mxu0 0.0
    %738 = vmatprep.subr.mxu0 0.0
    %739 = vmatpush1.msra.mxu0 0.0
    %740 = vmatprep.subr.mxu0 0.0
    %741 = vmatpush1.msra.mxu0 0.0
    %742 = vmatprep.subr.mxu0 0.0
    %743 = vmatpush1.msra.mxu0 0.0
    %744 = vmatprep.subr.mxu0 0.0
    %745 = vmatpush1.msra.mxu0 0.0
    %746 = vmatprep.subr.mxu0 0.0
    %747 = vmatpush1.msra.mxu0 0.0
    %748 = vmatprep.subr.mxu0 0.0
    %749 = vmatpush1.msra.mxu0 0.0
    %750 = vmatprep.subr.mxu0 0.0
    %751 = vmatpush1.msra.mxu0 0.0
    %752 = vmatprep.subr.mxu0 0.0
    %753 = vmatpush1.msra.mxu0 0.0
    %754 = vmatprep.mubr.f32.mxu0 0.0
    %755 = vmatmul.mubr.f32.gmra.mrb[0].mxu0 %v664
    %v756 = vpop.f32.mrb[0].mxu0
    %v757 = vadd.f32 0.0, %v756
    %v758 = vpop.f32.mrb[0].mxu0
    %759 = vmatprep.mubr.f32.mxu0 0.0
    %760 = vmatmul.mubr.f32.gmra.mrb[0].mxu0 %v667
    %v761 = vpop.f32.mrb[0].mxu0
    %v762 = vadd.f32 0.0, %v761
    %v763 = vpop.f32.mrb[0].mxu0
    %764 = vmatprep.mubr.f32.mxu0 0.0
    %765 = vmatmul.mubr.f32.gmra.mrb[0].mxu0 %v670
    %v766 = vpop.f32.mrb[0].mxu0
    %v767 = vadd.f32 0.0, %v766
    %v768 = vpop.f32.mrb[0].mxu0
    %769 = vmatprep.mubr.f32.mxu0 0.0
    %770 = vmatmul.mubr.f32.gmra.mrb[0].mxu0 %v673
    %v771 = vpop.f32.mrb[0].mxu0
    %v772 = vadd.f32 0.0, %v771
    %v773 = vpop.f32.mrb[0].mxu0
    %774 = vmatprep.mubr.f32.mxu0 0.0
    %775 = vmatmul.mubr.f32.gmra.mrb[0].mxu0 %v676
    %v776 = vpop.f32.mrb[0].mxu0
    %v777 = vadd.f32 0.0, %v776
    %v778 = vpop.f32.mrb[0].mxu0
    %779 = vmatprep.mubr.f32.mxu0 0.0
    %780 = vmatmul.mubr.f32.gmra.mrb[0].mxu0 %v679
    %v781 = vpop.f32.mrb[0].mxu0
    %v782 = vadd.f32 0.0, %v781
    %v783 = vpop.f32.mrb[0].mxu0
    %784 = vmatprep.mubr.f32.mxu0 0.0
    %785 = vmatmul.mubr.f32.gmra.mrb[0].mxu0 %v682
    %v786 = vpop.f32.mrb[0].mxu0
    %v787 = vadd.f32 0.0, %v786
    %v788 = vpop.f32.mrb[0].mxu0
    %789 = vmatprep.mubr.f32.mxu0 0.0
    %790 = vmatmul.mubr.f32.gmra.mrb[0].mxu0 %v685
    %v791 = vpop.f32.mrb[0].mxu0
    %v792 = vadd.f32 0.0, %v791
    %v793 = vpop.f32.mrb[0].mxu0
    %794 = vdwg.mxu0
    %v795 = vadd.f32 %v638, %v757
    %v796 = vadd.f32 %v639, %v762
    %v797 = vadd.f32 %v640, %v767
    %v798 = vadd.f32 %v641, %v772
    %v799 = vadd.f32 %v642, %v777
    %v800 = vadd.f32 %v643, %v782
    %v801 = vadd.f32 %v644, %v787
    %v802 = vadd.f32 %v645, %v792
    %v803 = vlaneseq
    %v804 = vshrl.u32 %v803, 7
    %v805 = vsub.s32 0, %v804
    %v806 = vrot.slane %v35, %v805
    %v807 = vadd.f32 %v795, %v806
    %v808 = vadd.f32 %v796, %v806
    %v809 = vadd.f32 %v797, %v806
    %v810 = vadd.f32 %v798, %v806
    %v811 = vadd.f32 %v799, %v806
    %v812 = vadd.f32 %v800, %v806
    %v813 = vadd.f32 %v801, %v806
    %v814 = vadd.f32 %v802, %v806
    %v815 = vmax.f32 %v807, 0.0
    %v816 = vmax.f32 %v808, 0.0
    %v817 = vmax.f32 %v809, 0.0
    %v818 = vmax.f32 %v810, 0.0
    %v819 = vmax.f32 %v811, 0.0
    %v820 = vmax.f32 %v812, 0.0
    %v821 = vmax.f32 %v813, 0.0
    %v822 = vmax.f32 %v814, 0.0
    %v823 = vadd.s32 %v56, 8
    %v824 = vadd.s32 %v56, 16
    %v825 = vadd.s32 %v56, 24
    %v826 = vadd.s32 %v56, 32
    %v827 = vadd.s32 %v56, 40
    %v828 = vadd.s32 %v56, 48
    %v829 = vadd.s32 %v56, 56
    %vm830 = vcmp.ge.s32.totalorder %v56, 0
    %vm831 = vcmp.ge.s32.totalorder %v823, 0
    %vm832 = vcmp.ge.s32.totalorder %v824, 0
    %vm833 = vcmp.ge.s32.totalorder %v825, 0
    %vm834 = vcmp.ge.s32.totalorder %v826, 0
    %vm835 = vcmp.ge.s32.totalorder %v827, 0
    %vm836 = vcmp.ge.s32.totalorder %v828, 0
    %vm837 = vcmp.ge.s32.totalorder %v829, 0
    %vm838 = vcmp.lt.s32.totalorder %v56, 28
    %vm839 = vcmp.lt.s32.totalorder %v823, 28
    %vm840 = vcmp.lt.s32.totalorder %v824, 28
    %vm841 = vcmp.lt.s32.totalorder %v825, 28
    %vm842 = vcmp.lt.s32.totalorder %v826, 28
    %vm843 = vcmp.lt.s32.totalorder %v827, 28
    %vm844 = vcmp.lt.s32.totalorder %v828, 28
    %vm845 = vcmp.lt.s32.totalorder %v829, 28
    %vm846 = vmand %vm830, %vm838
    %vm847 = vmand %vm831, %vm839
    %vm848 = vmand %vm832, %vm840
    %vm849 = vmand %vm833, %vm841
    %vm850 = vmand %vm834, %vm842
    %vm851 = vmand %vm835, %vm843
    %vm852 = vmand %vm836, %vm844
    %vm853 = vmand %vm837, %vm845
    %v854 = vsel %vm846, 1, 0
    %v855 = vsel %vm847, 1, 0
    %v856 = vsel %vm848, 1, 0
    %v857 = vsel %vm849, 1, 0
    %v858 = vsel %vm850, 1, 0
    %v859 = vsel %vm851, 1, 0
    %v860 = vsel %vm852, 1, 0
    %v861 = vsel %vm853, 1, 0
    %v862 = vcvt.s32.f32 %v854
    %v863 = vcvt.s32.f32 %v855
    %v864 = vcvt.s32.f32 %v856
    %v865 = vcvt.s32.f32 %v857
    %v866 = vcvt.s32.f32 %v858
    %v867 = vcvt.s32.f32 %v859
    %v868 = vcvt.s32.f32 %v860
    %v869 = vcvt.s32.f32 %v861
    %v870 = vadd.f32 %v862, 0.0
    %v871 = vadd.f32 %v863, 0.0
    %v872 = vadd.f32 %v864, 0.0
    %v873 = vadd.f32 %v865, 0.0
    %v874 = vadd.f32 %v866, 0.0
    %v875 = vadd.f32 %v867, 0.0
    %v876 = vadd.f32 %v868, 0.0
    %v877 = vadd.f32 %v869, 0.0
    %vm878 = vcmp.ge.s32.totalorder %v56, 32
    %vm879 = vcmp.ge.s32.totalorder %v823, 32
    %vm880 = vcmp.ge.s32.totalorder %v824, 32
    %vm881 = vcmp.ge.s32.totalorder %v825, 32
    %vm882 = vcmp.ge.s32.totalorder %v826, 32
    %vm883 = vcmp.ge.s32.totalorder %v827, 32
    %vm884 = vcmp.ge.s32.totalorder %v828, 32
    %vm885 = vcmp.ge.s32.totalorder %v829, 32
    %vm886 = vcmp.lt.s32.totalorder %v56, 60
    %vm887 = vcmp.lt.s32.totalorder %v823, 60
    %vm888 = vcmp.lt.s32.totalorder %v824, 60
    %vm889 = vcmp.lt.s32.totalorder %v825, 60
    %vm890 = vcmp.lt.s32.totalorder %v826, 60
    %vm891 = vcmp.lt.s32.totalorder %v827, 60
    %vm892 = vcmp.lt.s32.totalorder %v828, 60
    %vm893 = vcmp.lt.s32.totalorder %v829, 60
    %vm894 = vmand %vm878, %vm886
    %vm895 = vmand %vm879, %vm887
    %vm896 = vmand %vm880, %vm888
    %vm897 = vmand %vm881, %vm889
    %vm898 = vmand %vm882, %vm890
    %vm899 = vmand %vm883, %vm891
    %vm900 = vmand %vm884, %vm892
    %vm901 = vmand %vm885, %vm893
    %v902 = vsel %vm894, 1, 0
    %v903 = vsel %vm895, 1, 0
    %v904 = vsel %vm896, 1, 0
    %v905 = vsel %vm897, 1, 0
    %v906 = vsel %vm898, 1, 0
    %v907 = vsel %vm899, 1, 0
    %v908 = vsel %vm900, 1, 0
    %v909 = vsel %vm901, 1, 0
    %v910 = vcvt.s32.f32 %v902
    %v911 = vcvt.s32.f32 %v903
    %v912 = vcvt.s32.f32 %v904
    %v913 = vcvt.s32.f32 %v905
    %v914 = vcvt.s32.f32 %v906
    %v915 = vcvt.s32.f32 %v907
    %v916 = vcvt.s32.f32 %v908
    %v917 = vcvt.s32.f32 %v909
    %v918 = vadd.f32 %v870, %v910
    %v919 = vadd.f32 %v871, %v911
    %v920 = vadd.f32 %v872, %v912
    %v921 = vadd.f32 %v873, %v913
    %v922 = vadd.f32 %v874, %v914
    %v923 = vadd.f32 %v875, %v915
    %v924 = vadd.f32 %v876, %v916
    %v925 = vadd.f32 %v877, %v917
    %v926 = vmul.f32 %v815, %v918
    %v927 = vmul.f32 %v816, %v919
    %v928 = vmul.f32 %v817, %v920
    %v929 = vmul.f32 %v818, %v921
    %v930 = vmul.f32 %v819, %v922
    %v931 = vmul.f32 %v820, %v923
    %v932 = vmul.f32 %v821, %v924
    %v933 = vmul.f32 %v822, %v925
    %vm934 = vcmask 261120
    %v935 = vsel %vm934, %v926, 0.0
    %v936 = vsel %vm934, %v927, 0.0
    %v937 = vadd.f32 %v935, %v936
    %v938 = vsel %vm934, %v928, 0.0
    %v939 = vadd.f32 %v937, %v938
    %v940 = vsel %vm934, %v929, 0.0
    %v941 = vadd.f32 %v939, %v940
    %v942 = vsel %vm934, %v930, 0.0
    %v943 = vadd.f32 %v941, %v942
    %v944 = vsel %vm934, %v931, 0.0
    %v945 = vadd.f32 %v943, %v944
    %v946 = vsel %vm934, %v932, 0.0
    %v947 = vadd.f32 %v945, %v946
    %v948 = vsel %vm934, %v933, 0.0
    %v949 = vadd.f32 %v947, %v948
    %v950 = vrot.slane %v949, 4
    %v951 = vadd.f32 %v949, %v950
    %v952 = vrot.slane %v951, 2
    %v953 = vadd.f32 %v951, %v952
    %v954 = vrot.slane %v953, 1
    %v955 = vadd.f32 %v953, %v954
    %v956 = vmul.f32 %v955, 0.017857144
    %v957 = vmul.f32 %v926, %v815
    %v958 = vmul.f32 %v927, %v816
    %v959 = vmul.f32 %v928, %v817
    %v960 = vmul.f32 %v929, %v818
    %v961 = vmul.f32 %v930, %v819
    %v962 = vmul.f32 %v931, %v820
    %v963 = vmul.f32 %v932, %v821
    %v964 = vmul.f32 %v933, %v822
    %v965 = vsel %vm934, %v957, 0.0
    %v966 = vsel %vm934, %v958, 0.0
    %v967 = vadd.f32 %v965, %v966
    %v968 = vsel %vm934, %v959, 0.0
    %v969 = vadd.f32 %v967, %v968
    %v970 = vsel %vm934, %v960, 0.0
    %v971 = vadd.f32 %v969, %v970
    %v972 = vsel %vm934, %v961, 0.0
    %v973 = vadd.f32 %v971, %v972
    %v974 = vsel %vm934, %v962, 0.0
    %v975 = vadd.f32 %v973, %v974
    %v976 = vsel %vm934, %v963, 0.0
    %v977 = vadd.f32 %v975, %v976
    %v978 = vsel %vm934, %v964, 0.0
    %v979 = vadd.f32 %v977, %v978
    %v980 = vrot.slane %v979, 4
    %v981 = vadd.f32 %v979, %v980
    %v982 = vrot.slane %v981, 2
    %v983 = vadd.f32 %v981, %v982
    %v984 = vrot.slane %v983, 1
    %v985 = vadd.f32 %v983, %v984
    %v986 = vmul.f32 %v985, 0.017857144
    %v987 = vmul.f32 %v956, %v956
    %v988 = vsub.f32 %v986, %v987
    %v989 = vsub.f32 %v815, %v956
    %v990 = vsub.f32 %v816, %v956
    %v991 = vsub.f32 %v817, %v956
    %v992 = vsub.f32 %v818, %v956
    %v993 = vsub.f32 %v819, %v956
    %v994 = vsub.f32 %v820, %v956
    %v995 = vsub.f32 %v821, %v956
    %v996 = vsub.f32 %v822, %v956
    %v997 = vadd.f32 %v988, 1e-05
    %v998 = vrsqrt.pop %v997
    %v999 = vmul.f32 %v989, %v998
    %v1000 = vmul.f32 %v990, %v998
    %v1001 = vmul.f32 %v991, %v998
    %v1002 = vmul.f32 %v992, %v998
    %v1003 = vmul.f32 %v993, %v998
    %v1004 = vmul.f32 %v994, %v998
    %v1005 = vmul.f32 %v995, %v998
    %v1006 = vmul.f32 %v996, %v998
    %v1007 = vlaneseq
    %v1008 = vshrl.u32 %v1007, 7
    %v1009 = vsub.s32 1, %v1008
    %v1010 = vrot.slane %v35, %v1009
    %v1011 = vmul.f32 %v999, %v1010
    %v1012 = vmul.f32 %v1000, %v1010
    %v1013 = vmul.f32 %v1001, %v1010
    %v1014 = vmul.f32 %v1002, %v1010
    %v1015 = vmul.f32 %v1003, %v1010
    %v1016 = vmul.f32 %v1004, %v1010
    %v1017 = vmul.f32 %v1005, %v1010
    %v1018 = vmul.f32 %v1006, %v1010
    %v1019 = vlaneseq
    %v1020 = vshrl.u32 %v1019, 7
    %v1021 = vsub.s32 2, %v1020
    %v1022 = vrot.slane %v35, %v1021
    %v1023 = vadd.f32 %v1011, %v1022
    %v1024 = vadd.f32 %v1012, %v1022
    %v1025 = vadd.f32 %v1013, %v1022
    %v1026 = vadd.f32 %v1014, %v1022
    %v1027 = vadd.f32 %v1015, %v1022
    %v1028 = vadd.f32 %v1016, %v1022
    %v1029 = vadd.f32 %v1017, %v1022
    %v1030 = vadd.f32 %v1018, %v1022
    %1031 = vst.msk [vmem:[#allocation2] sm:$0xff] %vm934, %v1023
    %1032 = vst.msk [vmem:[#allocation2 + $0x8] sm:$0xff] %vm934, %v1024
    %1033 = vst.msk [vmem:[#allocation2 + $0x10] sm:$0xff] %vm934, %v1025
    %1034 = vst.msk [vmem:[#allocation2 + $0x18] sm:$0xff] %vm934, %v1026
    %1035 = vst.msk [vmem:[#allocation2 + $0x20] sm:$0xff] %vm934, %v1027
    %1036 = vst.msk [vmem:[#allocation2 + $0x28] sm:$0xff] %vm934, %v1028
    %1037 = vst.msk [vmem:[#allocation2 + $0x30] sm:$0xff] %vm934, %v1029
    %1038 = vst.msk [vmem:[#allocation2 + $0x38] sm:$0xff] %vm934, %v1030
    %v1039 = vld [vmem:[#allocation2] ss:$2 sm:$0xff]
    %s1040 = scalar_lea.vmem [#allocation2], 16
    %v1041 = vld [vmem:[%s1040] ss:$2 sm:$0xff]
    %s1042 = scalar_lea.vmem [#allocation2], 32
    %v1043 = vld [vmem:[%s1042] ss:$2 sm:$0xff]
    %s1044 = scalar_lea.vmem [#allocation2], 48
    %v1045 = vld [vmem:[%s1044] ss:$2 sm:$0xff]
    %s1046 = scalar_lea.vmem [#allocation2], 1
    %v1047 = vld [vmem:[%s1046] ss:$2 sm:$0xff]
    %s1048 = scalar_lea.vmem [#allocation2], 17
    %v1049 = vld [vmem:[%s1048] ss:$2 sm:$0xff]
    %s1050 = scalar_lea.vmem [#allocation2], 33
    %v1051 = vld [vmem:[%s1050] ss:$2 sm:$0xff]
    %s1052 = scalar_lea.vmem [#allocation2], 49
    %v1053 = vld [vmem:[%s1052] ss:$2 sm:$0xff]
    %v1054 = vmax.f32 %v1039, %v1047
    %v1055 = vmax.f32 %v1041, %v1049
    %v1056 = vmax.f32 %v1043, %v1051
    %v1057 = vmax.f32 %v1045, %v1053
    %v1058 = vld [vmem:[%s2] sm:$0xff]
    %v1059 = vld [vmem:[%s2 + $0x8] sm:$0xff]
    %v1060 = vld [vmem:[%s2 + $0x10] sm:$0xff]
    %v1061 = vld [vmem:[%s2 + $0x18] sm:$0xff]
    %v1062 = vld [vmem:[%s2 + $0x20] sm:$0xff]
    %v1063 = vld [vmem:[%s2 + $0x28] sm:$0xff]
    %v1064 = vld [vmem:[%s2 + $0x30] sm:$0xff]
    %v1065 = vld [vmem:[%s2 + $0x38] sm:$0xff]
    %v1066 = vld [vmem:[%s2 + $0x40] sm:$0xff]
    %v1067 = vld [vmem:[%s2 + $0x48] sm:$0xff]
    %v1068 = vld [vmem:[%s2 + $0x50] sm:$0xff]
    %v1069 = vld [vmem:[%s2 + $0x58] sm:$0xff]
    %v1070 = vld [vmem:[%s2 + $0x60] sm:$0xff]
    %v1071 = vld [vmem:[%s2 + $0x68] sm:$0xff]
    %v1072 = vld [vmem:[%s2 + $0x70] sm:$0xff]
    %v1073 = vld [vmem:[%s2 + $0x78] sm:$0xff]
    %v1074 = vld [vmem:[%s2 + $0x80] sm:$0xff]
    %v1075 = vld [vmem:[%s2 + $0x88] sm:$0xff]
    %v1076 = vld [vmem:[%s2 + $0x90] sm:$0xff]
    %v1077 = vld [vmem:[%s2 + $0x98] sm:$0xff]
    %v1078 = vrot.slane %v1054, 1
    %v1079 = vrot.slane %v1055, 1
    %v1080 = vrot.slane %v1056, 1
    %v1081 = vrot.slane %v1057, 1
    %v1082 = vsel %vm57, %v1080, %v1081
    %v1083 = vsel %vm57, %v1079, %v1080
    %v1084 = vsel %vm57, %v1078, %v1079
    %v1085 = vsel %vm57, %v1081, %v1078
    %v1087 = vsel %vm934, %v1084, 0
    %v1090 = vsel %vm934, %v1083, 0
    %v1093 = vsel %vm934, %v1082, 0
    %v1096 = vsel %vm934, %v1085, 0
    %1098 = vmatprep.subr.mxu0 0.0
    %1099 = vmatpush1.msra.mxu0 %v1062
    %1100 = vmatprep.subr.mxu0 0.0
    %1101 = vmatpush1.msra.mxu0 %v1063
    %1102 = vmatprep.subr.mxu0 0.0
    %1103 = vmatpush1.msra.mxu0 %v1064
    %1104 = vmatprep.subr.mxu0 0.0
    %1105 = vmatpush1.msra.mxu0 %v1065
    %1106 = vmatprep.subr.mxu0 0.0
    %1107 = vmatpush1.msra.mxu0 0.0
    %1108 = vmatprep.subr.mxu0 0.0
    %1109 = vmatpush1.msra.mxu0 0.0
    %1110 = vmatprep.subr.mxu0 0.0
    %1111 = vmatpush1.msra.mxu0 0.0
    %1112 = vmatprep.subr.mxu0 0.0
    %1113 = vmatpush1.msra.mxu0 0.0
    %1114 = vmatprep.subr.mxu0 0.0
    %1115 = vmatpush1.msra.mxu0 0.0
    %1116 = vmatprep.subr.mxu0 0.0
    %1117 = vmatpush1.msra.mxu0 0.0
    %1118 = vmatprep.subr.mxu0 0.0
    %1119 = vmatpush1.msra.mxu0 0.0
    %1120 = vmatprep.subr.mxu0 0.0
    %1121 = vmatpush1.msra.mxu0 0.0
    %1122 = vmatprep.subr.mxu0 0.0
    %1123 = vmatpush1.msra.mxu0 0.0
    %1124 = vmatprep.subr.mxu0 0.0
    %1125 = vmatpush1.msra.mxu0 0.0
    %1126 = vmatprep.subr.mxu0 0.0
    %1127 = vmatpush1.msra.mxu0 0.0
    %1128 = vmatprep.subr.mxu0 0.0
    %1129 = vmatpush1.msra.mxu0 0.0
    %1130 = vmatprep.subr.mxu0 0.0
    %1131 = vmatpush1.msra.mxu0 0.0
    %1132 = vmatprep.subr.mxu0 0.0
    %1133 = vmatpush1.msra.mxu0 0.0
    %1134 = vmatprep.subr.mxu0 0.0
    %1135 = vmatpush1.msra.mxu0 0.0
    %1136 = vmatprep.subr.mxu0 0.0
    %1137 = vmatpush1.msra.mxu0 0.0
    %1138 = vmatprep.subr.mxu0 0.0
    %1139 = vmatpush1.msra.mxu0 0.0
    %1140 = vmatprep.subr.mxu0 0.0
    %1141 = vmatpush1.msra.mxu0 0.0
    %1142 = vmatprep.subr.mxu0 0.0
    %1143 = vmatpush1.msra.mxu0 0.0
    %1144 = vmatprep.subr.mxu0 0.0
    %1145 = vmatpush1.msra.mxu0 0.0
    %1146 = vmatprep.subr.mxu0 0.0
    %1147 = vmatpush1.msra.mxu0 0.0
    %1148 = vmatprep.subr.mxu0 0.0
    %1149 = vmatpush1.msra.mxu0 0.0
    %1150 = vmatprep.subr.mxu0 0.0
    %1151 = vmatpush1.msra.mxu0 0.0
    %1152 = vmatprep.subr.mxu0 0.0
    %1153 = vmatpush1.msra.mxu0 0.0
    %1154 = vmatprep.subr.mxu0 0.0
    %1155 = vmatpush1.msra.mxu0 0.0
    %1156 = vmatprep.subr.mxu0 0.0
    %1157 = vmatpush1.msra.mxu0 0.0
    %1158 = vmatprep.subr.mxu0 0.0
    %1159 = vmatpush1.msra.mxu0 0.0
    %1160 = vmatprep.subr.mxu0 0.0
    %1161 = vmatpush1.msra.mxu0 0.0
    %1162 = vmatprep.mubr.f32.mxu0 0.0
    %1163 = vmatmul.mubr.f32.gmra.mrb[0].mxu0 %v1087
    %v1164 = vpop.f32.mrb[0].mxu0
    %v1165 = vadd.f32 0.0, %v1164
    %v1166 = vpop.f32.mrb[0].mxu0
    %1167 = vmatprep.mubr.f32.mxu0 0.0
    %1168 = vmatmul.mubr.f32.gmra.mrb[0].mxu0 %v1090
    %v1169 = vpop.f32.mrb[0].mxu0
    %v1170 = vadd.f32 0.0, %v1169
    %v1171 = vpop.f32.mrb[0].mxu0
    %1172 = vmatprep.mubr.f32.mxu0 0.0
    %1173 = vmatmul.mubr.f32.gmra.mrb[0].mxu0 %v1093
    %v1174 = vpop.f32.mrb[0].mxu0
    %v1175 = vadd.f32 0.0, %v1174
    %v1176 = vpop.f32.mrb[0].mxu0
    %1177 = vmatprep.mubr.f32.mxu0 0.0
    %1178 = vmatmul.mubr.f32.gmra.mrb[0].mxu0 %v1096
    %v1179 = vpop.f32.mrb[0].mxu0
    %v1180 = vadd.f32 0.0, %v1179
    %v1181 = vpop.f32.mrb[0].mxu0
    %1182 = vdwg.mxu0
    %v1184 = vsel %vm934, %v1054, 0
    %v1187 = vsel %vm934, %v1055, 0
    %v1190 = vsel %vm934, %v1056, 0
    %v1193 = vsel %vm934, %v1057, 0
    %1195 = vmatprep.subr.mxu0 0.0
    %1196 = vmatpush1.msra.mxu0 %v1058
    %1197 = vmatprep.subr.mxu0 0.0
    %1198 = vmatpush1.msra.mxu0 %v1059
    %1199 = vmatprep.subr.mxu0 0.0
    %1200 = vmatpush1.msra.mxu0 %v1060
    %1201 = vmatprep.subr.mxu0 0.0
    %1202 = vmatpush1.msra.mxu0 %v1061
    %1203 = vmatprep.subr.mxu0 0.0
    %1204 = vmatpush1.msra.mxu0 0.0
    %1205 = vmatprep.subr.mxu0 0.0
    %1206 = vmatpush1.msra.mxu0 0.0
    %1207 = vmatprep.subr.mxu0 0.0
    %1208 = vmatpush1.msra.mxu0 0.0
    %1209 = vmatprep.subr.mxu0 0.0
    %1210 = vmatpush1.msra.mxu0 0.0
    %1211 = vmatprep.subr.mxu0 0.0
    %1212 = vmatpush1.msra.mxu0 0.0
    %1213 = vmatprep.subr.mxu0 0.0
    %1214 = vmatpush1.msra.mxu0 0.0
    %1215 = vmatprep.subr.mxu0 0.0
    %1216 = vmatpush1.msra.mxu0 0.0
    %1217 = vmatprep.subr.mxu0 0.0
    %1218 = vmatpush1.msra.mxu0 0.0
    %1219 = vmatprep.subr.mxu0 0.0
    %1220 = vmatpush1.msra.mxu0 0.0
    %1221 = vmatprep.subr.mxu0 0.0
    %1222 = vmatpush1.msra.mxu0 0.0
    %1223 = vmatprep.subr.mxu0 0.0
    %1224 = vmatpush1.msra.mxu0 0.0
    %1225 = vmatprep.subr.mxu0 0.0
    %1226 = vmatpush1.msra.mxu0 0.0
    %1227 = vmatprep.subr.mxu0 0.0
    %1228 = vmatpush1.msra.mxu0 0.0
    %1229 = vmatprep.subr.mxu0 0.0
    %1230 = vmatpush1.msra.mxu0 0.0
    %1231 = vmatprep.subr.mxu0 0.0
    %1232 = vmatpush1.msra.mxu0 0.0
    %1233 = vmatprep.subr.mxu0 0.0
    %1234 = vmatpush1.msra.mxu0 0.0
    %1235 = vmatprep.subr.mxu0 0.0
    %1236 = vmatpush1.msra.mxu0 0.0
    %1237 = vmatprep.subr.mxu0 0.0
    %1238 = vmatpush1.msra.mxu0 0.0
    %1239 = vmatprep.subr.mxu0 0.0
    %1240 = vmatpush1.msra.mxu0 0.0
    %1241 = vmatprep.subr.mxu0 0.0
    %1242 = vmatpush1.msra.mxu0 0.0
    %1243 = vmatprep.subr.mxu0 0.0
    %1244 = vmatpush1.msra.mxu0 0.0
    %1245 = vmatprep.subr.mxu0 0.0
    %1246 = vmatpush1.msra.mxu0 0.0
    %1247 = vmatprep.subr.mxu0 0.0
    %1248 = vmatpush1.msra.mxu0 0.0
    %1249 = vmatprep.subr.mxu0 0.0
    %1250 = vmatpush1.msra.mxu0 0.0
    %1251 = vmatprep.subr.mxu0 0.0
    %1252 = vmatpush1.msra.mxu0 0.0
    %1253 = vmatprep.subr.mxu0 0.0
    %1254 = vmatpush1.msra.mxu0 0.0
    %1255 = vmatprep.subr.mxu0 0.0
    %1256 = vmatpush1.msra.mxu0 0.0
    %1257 = vmatprep.subr.mxu0 0.0
    %1258 = vmatpush1.msra.mxu0 0.0
    %1259 = vmatprep.mubr.f32.mxu0 0.0
    %1260 = vmatmul.mubr.f32.gmra.mrb[0].mxu0 %v1184
    %v1261 = vpop.f32.mrb[0].mxu0
    %v1262 = vadd.f32 %v1165, %v1261
    %v1263 = vpop.f32.mrb[0].mxu0
    %1264 = vmatprep.mubr.f32.mxu0 0.0
    %1265 = vmatmul.mubr.f32.gmra.mrb[0].mxu0 %v1187
    %v1266 = vpop.f32.mrb[0].mxu0
    %v1267 = vadd.f32 %v1170, %v1266
    %v1268 = vpop.f32.mrb[0].mxu0
    %1269 = vmatprep.mubr.f32.mxu0 0.0
    %1270 = vmatmul.mubr.f32.gmra.mrb[0].mxu0 %v1190
    %v1271 = vpop.f32.mrb[0].mxu0
    %v1272 = vadd.f32 %v1175, %v1271
    %v1273 = vpop.f32.mrb[0].mxu0
    %1274 = vmatprep.mubr.f32.mxu0 0.0
    %1275 = vmatmul.mubr.f32.gmra.mrb[0].mxu0 %v1193
    %v1276 = vpop.f32.mrb[0].mxu0
    %v1277 = vadd.f32 %v1180, %v1276
    %v1278 = vpop.f32.mrb[0].mxu0
    %1279 = vdwg.mxu0
    %v1280 = vrot.slane %v1054, 2
    %v1281 = vrot.slane %v1055, 2
    %v1282 = vrot.slane %v1056, 2
    %v1283 = vrot.slane %v1057, 2
    %v1284 = vsel %vm340, %v1282, %v1283
    %v1285 = vsel %vm340, %v1281, %v1282
    %v1286 = vsel %vm340, %v1280, %v1281
    %v1287 = vsel %vm340, %v1283, %v1280
    %v1289 = vsel %vm934, %v1286, 0
    %v1292 = vsel %vm934, %v1285, 0
    %v1295 = vsel %vm934, %v1284, 0
    %v1298 = vsel %vm934, %v1287, 0
    %1300 = vmatprep.subr.mxu0 0.0
    %1301 = vmatpush1.msra.mxu0 %v1066
    %1302 = vmatprep.subr.mxu0 0.0
    %1303 = vmatpush1.msra.mxu0 %v1067
    %1304 = vmatprep.subr.mxu0 0.0
    %1305 = vmatpush1.msra.mxu0 %v1068
    %1306 = vmatprep.subr.mxu0 0.0
    %1307 = vmatpush1.msra.mxu0 %v1069
    %1308 = vmatprep.subr.mxu0 0.0
    %1309 = vmatpush1.msra.mxu0 0.0
    %1310 = vmatprep.subr.mxu0 0.0
    %1311 = vmatpush1.msra.mxu0 0.0
    %1312 = vmatprep.subr.mxu0 0.0
    %1313 = vmatpush1.msra.mxu0 0.0
    %1314 = vmatprep.subr.mxu0 0.0
    %1315 = vmatpush1.msra.mxu0 0.0
    %1316 = vmatprep.subr.mxu0 0.0
    %1317 = vmatpush1.msra.mxu0 0.0
    %1318 = vmatprep.subr.mxu0 0.0
    %1319 = vmatpush1.msra.mxu0 0.0
    %1320 = vmatprep.subr.mxu0 0.0
    %1321 = vmatpush1.msra.mxu0 0.0
    %1322 = vmatprep.subr.mxu0 0.0
    %1323 = vmatpush1.msra.mxu0 0.0
    %1324 = vmatprep.subr.mxu0 0.0
    %1325 = vmatpush1.msra.mxu0 0.0
    %1326 = vmatprep.subr.mxu0 0.0
    %1327 = vmatpush1.msra.mxu0 0.0
    %1328 = vmatprep.subr.mxu0 0.0
    %1329 = vmatpush1.msra.mxu0 0.0
    %1330 = vmatprep.subr.mxu0 0.0
    %1331 = vmatpush1.msra.mxu0 0.0
    %1332 = vmatprep.subr.mxu0 0.0
    %1333 = vmatpush1.msra.mxu0 0.0
    %1334 = vmatprep.subr.mxu0 0.0
    %1335 = vmatpush1.msra.mxu0 0.0
    %1336 = vmatprep.subr.mxu0 0.0
    %1337 = vmatpush1.msra.mxu0 0.0
    %1338 = vmatprep.subr.mxu0 0.0
    %1339 = vmatpush1.msra.mxu0 0.0
    %1340 = vmatprep.subr.mxu0 0.0
    %1341 = vmatpush1.msra.mxu0 0.0
    %1342 = vmatprep.subr.mxu0 0.0
    %1343 = vmatpush1.msra.mxu0 0.0
    %1344 = vmatprep.subr.mxu0 0.0
    %1345 = vmatpush1.msra.mxu0 0.0
    %1346 = vmatprep.subr.mxu0 0.0
    %1347 = vmatpush1.msra.mxu0 0.0
    %1348 = vmatprep.subr.mxu0 0.0
    %1349 = vmatpush1.msra.mxu0 0.0
    %1350 = vmatprep.subr.mxu0 0.0
    %1351 = vmatpush1.msra.mxu0 0.0
    %1352 = vmatprep.subr.mxu0 0.0
    %1353 = vmatpush1.msra.mxu0 0.0
    %1354 = vmatprep.subr.mxu0 0.0
    %1355 = vmatpush1.msra.mxu0 0.0
    %1356 = vmatprep.subr.mxu0 0.0
    %1357 = vmatpush1.msra.mxu0 0.0
    %1358 = vmatprep.subr.mxu0 0.0
    %1359 = vmatpush1.msra.mxu0 0.0
    %1360 = vmatprep.subr.mxu0 0.0
    %1361 = vmatpush1.msra.mxu0 0.0
    %1362 = vmatprep.subr.mxu0 0.0
    %1363 = vmatpush1.msra.mxu0 0.0
    %1364 = vmatprep.mubr.f32.mxu0 0.0
    %1365 = vmatmul.mubr.f32.gmra.mrb[0].mxu0 %v1289
    %v1366 = vpop.f32.mrb[0].mxu0
    %v1367 = vadd.f32 0.0, %v1366
    %v1368 = vpop.f32.mrb[0].mxu0
    %1369 = vmatprep.mubr.f32.mxu0 0.0
    %1370 = vmatmul.mubr.f32.gmra.mrb[0].mxu0 %v1292
    %v1371 = vpop.f32.mrb[0].mxu0
    %v1372 = vadd.f32 0.0, %v1371
    %v1373 = vpop.f32.mrb[0].mxu0
    %1374 = vmatprep.mubr.f32.mxu0 0.0
    %1375 = vmatmul.mubr.f32.gmra.mrb[0].mxu0 %v1295
    %v1376 = vpop.f32.mrb[0].mxu0
    %v1377 = vadd.f32 0.0, %v1376
    %v1378 = vpop.f32.mrb[0].mxu0
    %1379 = vmatprep.mubr.f32.mxu0 0.0
    %1380 = vmatmul.mubr.f32.gmra.mrb[0].mxu0 %v1298
    %v1381 = vpop.f32.mrb[0].mxu0
    %v1382 = vadd.f32 0.0, %v1381
    %v1383 = vpop.f32.mrb[0].mxu0
    %1384 = vdwg.mxu0
    %v1385 = vadd.f32 %v1262, %v1367
    %v1386 = vadd.f32 %v1267, %v1372
    %v1387 = vadd.f32 %v1272, %v1377
    %v1388 = vadd.f32 %v1277, %v1382
    %v1389 = vrot.slane %v1054, 3
    %v1390 = vrot.slane %v1055, 3
    %v1391 = vrot.slane %v1056, 3
    %v1392 = vrot.slane %v1057, 3
    %v1393 = vsel %vm497, %v1391, %v1392
    %v1394 = vsel %vm497, %v1390, %v1391
    %v1395 = vsel %vm497, %v1389, %v1390
    %v1396 = vsel %vm497, %v1392, %v1389
    %v1398 = vsel %vm934, %v1395, 0
    %v1401 = vsel %vm934, %v1394, 0
    %v1404 = vsel %vm934, %v1393, 0
    %v1407 = vsel %vm934, %v1396, 0
    %1409 = vmatprep.subr.mxu0 0.0
    %1410 = vmatpush1.msra.mxu0 %v1070
    %1411 = vmatprep.subr.mxu0 0.0
    %1412 = vmatpush1.msra.mxu0 %v1071
    %1413 = vmatprep.subr.mxu0 0.0
    %1414 = vmatpush1.msra.mxu0 %v1072
    %1415 = vmatprep.subr.mxu0 0.0
    %1416 = vmatpush1.msra.mxu0 %v1073
    %1417 = vmatprep.subr.mxu0 0.0
    %1418 = vmatpush1.msra.mxu0 0.0
    %1419 = vmatprep.subr.mxu0 0.0
    %1420 = vmatpush1.msra.mxu0 0.0
    %1421 = vmatprep.subr.mxu0 0.0
    %1422 = vmatpush1.msra.mxu0 0.0
    %1423 = vmatprep.subr.mxu0 0.0
    %1424 = vmatpush1.msra.mxu0 0.0
    %1425 = vmatprep.subr.mxu0 0.0
    %1426 = vmatpush1.msra.mxu0 0.0
    %1427 = vmatprep.subr.mxu0 0.0
    %1428 = vmatpush1.msra.mxu0 0.0
    %1429 = vmatprep.subr.mxu0 0.0
    %1430 = vmatpush1.msra.mxu0 0.0
    %1431 = vmatprep.subr.mxu0 0.0
    %1432 = vmatpush1.msra.mxu0 0.0
    %1433 = vmatprep.subr.mxu0 0.0
    %1434 = vmatpush1.msra.mxu0 0.0
    %1435 = vmatprep.subr.mxu0 0.0
    %1436 = vmatpush1.msra.mxu0 0.0
    %1437 = vmatprep.subr.mxu0 0.0
    %1438 = vmatpush1.msra.mxu0 0.0
    %1439 = vmatprep.subr.mxu0 0.0
    %1440 = vmatpush1.msra.mxu0 0.0
    %1441 = vmatprep.subr.mxu0 0.0
    %1442 = vmatpush1.msra.mxu0 0.0
    %1443 = vmatprep.subr.mxu0 0.0
    %1444 = vmatpush1.msra.mxu0 0.0
    %1445 = vmatprep.subr.mxu0 0.0
    %1446 = vmatpush1.msra.mxu0 0.0
    %1447 = vmatprep.subr.mxu0 0.0
    %1448 = vmatpush1.msra.mxu0 0.0
    %1449 = vmatprep.subr.mxu0 0.0
    %1450 = vmatpush1.msra.mxu0 0.0
    %1451 = vmatprep.subr.mxu0 0.0
    %1452 = vmatpush1.msra.mxu0 0.0
    %1453 = vmatprep.subr.mxu0 0.0
    %1454 = vmatpush1.msra.mxu0 0.0
    %1455 = vmatprep.subr.mxu0 0.0
    %1456 = vmatpush1.msra.mxu0 0.0
    %1457 = vmatprep.subr.mxu0 0.0
    %1458 = vmatpush1.msra.mxu0 0.0
    %1459 = vmatprep.subr.mxu0 0.0
    %1460 = vmatpush1.msra.mxu0 0.0
    %1461 = vmatprep.subr.mxu0 0.0
    %1462 = vmatpush1.msra.mxu0 0.0
    %1463 = vmatprep.subr.mxu0 0.0
    %1464 = vmatpush1.msra.mxu0 0.0
    %1465 = vmatprep.subr.mxu0 0.0
    %1466 = vmatpush1.msra.mxu0 0.0
    %1467 = vmatprep.subr.mxu0 0.0
    %1468 = vmatpush1.msra.mxu0 0.0
    %1469 = vmatprep.subr.mxu0 0.0
    %1470 = vmatpush1.msra.mxu0 0.0
    %1471 = vmatprep.subr.mxu0 0.0
    %1472 = vmatpush1.msra.mxu0 0.0
    %1473 = vmatprep.mubr.f32.mxu0 0.0
    %1474 = vmatmul.mubr.f32.gmra.mrb[0].mxu0 %v1398
    %v1475 = vpop.f32.mrb[0].mxu0
    %v1476 = vadd.f32 0.0, %v1475
    %v1477 = vpop.f32.mrb[0].mxu0
    %1478 = vmatprep.mubr.f32.mxu0 0.0
    %1479 = vmatmul.mubr.f32.gmra.mrb[0].mxu0 %v1401
    %v1480 = vpop.f32.mrb[0].mxu0
    %v1481 = vadd.f32 0.0, %v1480
    %v1482 = vpop.f32.mrb[0].mxu0
    %1483 = vmatprep.mubr.f32.mxu0 0.0
    %1484 = vmatmul.mubr.f32.gmra.mrb[0].mxu0 %v1404
    %v1485 = vpop.f32.mrb[0].mxu0
    %v1486 = vadd.f32 0.0, %v1485
    %v1487 = vpop.f32.mrb[0].mxu0
    %1488 = vmatprep.mubr.f32.mxu0 0.0
    %1489 = vmatmul.mubr.f32.gmra.mrb[0].mxu0 %v1407
    %v1490 = vpop.f32.mrb[0].mxu0
    %v1491 = vadd.f32 0.0, %v1490
    %v1492 = vpop.f32.mrb[0].mxu0
    %1493 = vdwg.mxu0
    %v1494 = vadd.f32 %v1385, %v1476
    %v1495 = vadd.f32 %v1386, %v1481
    %v1496 = vadd.f32 %v1387, %v1486
    %v1497 = vadd.f32 %v1388, %v1491
    %v1498 = vrot.slane %v1054, 4
    %v1499 = vrot.slane %v1055, 4
    %v1500 = vrot.slane %v1056, 4
    %v1501 = vrot.slane %v1057, 4
    %v1502 = vsel %vm654, %v1500, %v1501
    %v1503 = vsel %vm654, %v1499, %v1500
    %v1504 = vsel %vm654, %v1498, %v1499
    %v1505 = vsel %vm654, %v1501, %v1498
    %v1507 = vsel %vm934, %v1504, 0
    %v1510 = vsel %vm934, %v1503, 0
    %v1513 = vsel %vm934, %v1502, 0
    %v1516 = vsel %vm934, %v1505, 0
    %1518 = vmatprep.subr.mxu0 0.0
    %1519 = vmatpush1.msra.mxu0 %v1074
    %1520 = vmatprep.subr.mxu0 0.0
    %1521 = vmatpush1.msra.mxu0 %v1075
    %1522 = vmatprep.subr.mxu0 0.0
    %1523 = vmatpush1.msra.mxu0 %v1076
    %1524 = vmatprep.subr.mxu0 0.0
    %1525 = vmatpush1.msra.mxu0 %v1077
    %1526 = vmatprep.subr.mxu0 0.0
    %1527 = vmatpush1.msra.mxu0 0.0
    %1528 = vmatprep.subr.mxu0 0.0
    %1529 = vmatpush1.msra.mxu0 0.0
    %1530 = vmatprep.subr.mxu0 0.0
    %1531 = vmatpush1.msra.mxu0 0.0
    %1532 = vmatprep.subr.mxu0 0.0
    %1533 = vmatpush1.msra.mxu0 0.0
    %1534 = vmatprep.subr.mxu0 0.0
    %1535 = vmatpush1.msra.mxu0 0.0
    %1536 = vmatprep.subr.mxu0 0.0
    %1537 = vmatpush1.msra.mxu0 0.0
    %1538 = vmatprep.subr.mxu0 0.0
    %1539 = vmatpush1.msra.mxu0 0.0
    %1540 = vmatprep.subr.mxu0 0.0
    %1541 = vmatpush1.msra.mxu0 0.0
    %1542 = vmatprep.subr.mxu0 0.0
    %1543 = vmatpush1.msra.mxu0 0.0
    %1544 = vmatprep.subr.mxu0 0.0
    %1545 = vmatpush1.msra.mxu0 0.0
    %1546 = vmatprep.subr.mxu0 0.0
    %1547 = vmatpush1.msra.mxu0 0.0
    %1548 = vmatprep.subr.mxu0 0.0
    %1549 = vmatpush1.msra.mxu0 0.0
    %1550 = vmatprep.subr.mxu0 0.0
    %1551 = vmatpush1.msra.mxu0 0.0
    %1552 = vmatprep.subr.mxu0 0.0
    %1553 = vmatpush1.msra.mxu0 0.0
    %1554 = vmatprep.subr.mxu0 0.0
    %1555 = vmatpush1.msra.mxu0 0.0
    %1556 = vmatprep.subr.mxu0 0.0
    %1557 = vmatpush1.msra.mxu0 0.0
    %1558 = vmatprep.subr.mxu0 0.0
    %1559 = vmatpush1.msra.mxu0 0.0
    %1560 = vmatprep.subr.mxu0 0.0
    %1561 = vmatpush1.msra.mxu0 0.0
    %1562 = vmatprep.subr.mxu0 0.0
    %1563 = vmatpush1.msra.mxu0 0.0
    %1564 = vmatprep.subr.mxu0 0.0
    %1565 = vmatpush1.msra.mxu0 0.0
    %1566 = vmatprep.subr.mxu0 0.0
    %1567 = vmatpush1.msra.mxu0 0.0
    %1568 = vmatprep.subr.mxu0 0.0
    %1569 = vmatpush1.msra.mxu0 0.0
    %1570 = vmatprep.subr.mxu0 0.0
    %1571 = vmatpush1.msra.mxu0 0.0
    %1572 = vmatprep.subr.mxu0 0.0
    %1573 = vmatpush1.msra.mxu0 0.0
    %1574 = vmatprep.subr.mxu0 0.0
    %1575 = vmatpush1.msra.mxu0 0.0
    %1576 = vmatprep.subr.mxu0 0.0
    %1577 = vmatpush1.msra.mxu0 0.0
    %1578 = vmatprep.subr.mxu0 0.0
    %1579 = vmatpush1.msra.mxu0 0.0
    %1580 = vmatprep.subr.mxu0 0.0
    %1581 = vmatpush1.msra.mxu0 0.0
    %1582 = vmatprep.mubr.f32.mxu0 0.0
    %1583 = vmatmul.mubr.f32.gmra.mrb[0].mxu0 %v1507
    %v1584 = vpop.f32.mrb[0].mxu0
    %v1585 = vadd.f32 0.0, %v1584
    %v1586 = vpop.f32.mrb[0].mxu0
    %1587 = vmatprep.mubr.f32.mxu0 0.0
    %1588 = vmatmul.mubr.f32.gmra.mrb[0].mxu0 %v1510
    %v1589 = vpop.f32.mrb[0].mxu0
    %v1590 = vadd.f32 0.0, %v1589
    %v1591 = vpop.f32.mrb[0].mxu0
    %1592 = vmatprep.mubr.f32.mxu0 0.0
    %1593 = vmatmul.mubr.f32.gmra.mrb[0].mxu0 %v1513
    %v1594 = vpop.f32.mrb[0].mxu0
    %v1595 = vadd.f32 0.0, %v1594
    %v1596 = vpop.f32.mrb[0].mxu0
    %1597 = vmatprep.mubr.f32.mxu0 0.0
    %1598 = vmatmul.mubr.f32.gmra.mrb[0].mxu0 %v1516
    %v1599 = vpop.f32.mrb[0].mxu0
    %v1600 = vadd.f32 0.0, %v1599
    %v1601 = vpop.f32.mrb[0].mxu0
    %1602 = vdwg.mxu0
    %v1603 = vadd.f32 %v1494, %v1585
    %v1604 = vadd.f32 %v1495, %v1590
    %v1605 = vadd.f32 %v1496, %v1595
    %v1606 = vadd.f32 %v1497, %v1600
    %v1607 = vlaneseq
    %v1608 = vshrl.u32 %v1607, 7
    %v1609 = vsub.s32 3, %v1608
    %v1610 = vrot.slane %v35, %v1609
    %v1611 = vadd.f32 %v1603, %v1610
    %v1612 = vadd.f32 %v1604, %v1610
    %v1613 = vadd.f32 %v1605, %v1610
    %v1614 = vadd.f32 %v1606, %v1610
    %v1615 = vmax.f32 %v1611, 0.0
    %v1616 = vmax.f32 %v1612, 0.0
    %v1617 = vmax.f32 %v1613, 0.0
    %v1618 = vmax.f32 %v1614, 0.0
    %v1619 = vlaneseq
    %v1620 = vand.u32 %v1619, 127
    %v1621 = vmul.u32 %v56, 16
    %vm1622 = vcmp.ge.s32.totalorder %v1620, %v1621
    %v1623 = vadd.s32 %v1621, 10
    %vm1624 = vcmp.lt.s32.totalorder %v1620, %v1623
    %vm1625 = vmand %vm1622, %vm1624
    %v1626 = vsel %vm1625, 0.1, 0.0
    %vm1627 = vcmask 254976
    %v1628 = vsel %vm1627, %v1626, 0.0
    %v1629 = vrot.slane %v1628, 4
    %v1630 = vadd.f32 %v1628, %v1629
    %v1631 = vrot.slane %v1630, 2
    %v1632 = vadd.f32 %v1630, %v1631
    %v1633 = vrot.slane %v1632, 1
    %v1634 = vadd.f32 %v1632, %v1633
    %vm1635 = vcmask 1041408
    %v1636 = vsel %vm1635, %v1626, %v1634
    %v1637 = vmul.f32 %v1615, %v1615
    %v1638 = vmul.f32 %v1616, %v1616
    %v1639 = vmul.f32 %v1617, %v1617
    %v1640 = vmul.f32 %v1618, %v1618
    %1645 = vrot.lane.b32.xlu0 %v1637, 32
    %v1646 = vpop.permute.xlu0 %1645
    %1647 = vrot.lane.b32.xlu0 %v1638, 32
    %v1648 = vpop.permute.xlu0 %1647
    %1649 = vrot.lane.b32.xlu0 %v1639, 32
    %v1650 = vpop.permute.xlu0 %1649
    %1651 = vrot.lane.b32.xlu0 %v1640, 32
    %v1652 = vpop.permute.xlu0 %1651
    %v1657 = vsel %vm934, %v1615, %v1646
    %v1658 = vsel %vm934, %v1616, %v1648
    %v1659 = vsel %vm934, %v1617, %v1650
    %v1660 = vsel %vm934, %v1618, %v1652
    %v1662 = vsel %vm934, %v1636, 0
    %1664 = vmatprep.subr.mxu0 0.0
    %1665 = vmatpush1.msra.mxu0 %v1657
    %1666 = vmatprep.subr.mxu0 0.0
    %1667 = vmatpush1.msra.mxu0 %v1658
    %1668 = vmatprep.subr.mxu0 0.0
    %1669 = vmatpush1.msra.mxu0 %v1659
    %1670 = vmatprep.subr.mxu0 0.0
    %1671 = vmatpush1.msra.mxu0 %v1660
    %1672 = vmatprep.subr.mxu0 0.0
    %1673 = vmatpush1.msra.mxu0 0.0
    %1674 = vmatprep.subr.mxu0 0.0
    %1675 = vmatpush1.msra.mxu0 0.0
    %1676 = vmatprep.subr.mxu0 0.0
    %1677 = vmatpush1.msra.mxu0 0.0
    %1678 = vmatprep.subr.mxu0 0.0
    %1679 = vmatpush1.msra.mxu0 0.0
    %1680 = vmatprep.subr.mxu0 0.0
    %1681 = vmatpush1.msra.mxu0 0.0
    %1682 = vmatprep.subr.mxu0 0.0
    %1683 = vmatpush1.msra.mxu0 0.0
    %1684 = vmatprep.subr.mxu0 0.0
    %1685 = vmatpush1.msra.mxu0 0.0
    %1686 = vmatprep.subr.mxu0 0.0
    %1687 = vmatpush1.msra.mxu0 0.0
    %1688 = vmatprep.subr.mxu0 0.0
    %1689 = vmatpush1.msra.mxu0 0.0
    %1690 = vmatprep.subr.mxu0 0.0
    %1691 = vmatpush1.msra.mxu0 0.0
    %1692 = vmatprep.subr.mxu0 0.0
    %1693 = vmatpush1.msra.mxu0 0.0
    %1694 = vmatprep.subr.mxu0 0.0
    %1695 = vmatpush1.msra.mxu0 0.0
    %1696 = vmatprep.subr.mxu0 0.0
    %1697 = vmatpush1.msra.mxu0 0.0
    %1698 = vmatprep.subr.mxu0 0.0
    %1699 = vmatpush1.msra.mxu0 0.0
    %1700 = vmatprep.subr.mxu0 0.0
    %1701 = vmatpush1.msra.mxu0 0.0
    %1702 = vmatprep.subr.mxu0 0.0
    %1703 = vmatpush1.msra.mxu0 0.0
    %1704 = vmatprep.subr.mxu0 0.0
    %1705 = vmatpush1.msra.mxu0 0.0
    %1706 = vmatprep.subr.mxu0 0.0
    %1707 = vmatpush1.msra.mxu0 0.0
    %1708 = vmatprep.subr.mxu0 0.0
    %1709 = vmatpush1.msra.mxu0 0.0
    %1710 = vmatprep.subr.mxu0 0.0
    %1711 = vmatpush1.msra.mxu0 0.0
    %1712 = vmatprep.subr.mxu0 0.0
    %1713 = vmatpush1.msra.mxu0 0.0
    %1714 = vmatprep.subr.mxu0 0.0
    %1715 = vmatpush1.msra.mxu0 0.0
    %1716 = vmatprep.subr.mxu0 0.0
    %1717 = vmatpush1.msra.mxu0 0.0
    %1718 = vmatprep.subr.mxu0 0.0
    %1719 = vmatpush1.msra.mxu0 0.0
    %1720 = vmatprep.subr.mxu0 0.0
    %1721 = vmatpush1.msra.mxu0 0.0
    %1722 = vmatprep.subr.mxu0 0.0
    %1723 = vmatpush1.msra.mxu0 0.0
    %1724 = vmatprep.subr.mxu0 0.0
    %1725 = vmatpush1.msra.mxu0 0.0
    %1726 = vmatprep.subr.mxu0 0.0
    %1727 = vmatpush1.msra.mxu0 0.0
    %1728 = vmatprep.mubr.f32.mxu0 0.0
    %1729 = vmatmul.mubr.f32.gmra.mrb[0].mxu0 %v1662
    %v1730 = vpop.f32.mrb[0].mxu0
    %v1731 = vadd.f32 0.0, %v1730
    %v1732 = vpop.f32.mrb[0].mxu0
    %1733 = vdwg.mxu0
    %v1734 = vmul.f32 %v1731, 0.5
    %v1735 = vmul.f32 %v1734, %v1734
    %1737 = vrot.lane.b32.xlu0 %v1735, 32
    %v1738 = vpop.permute.xlu0 %1737
    %v1740 = vsub.f32 %v1734, %v1738
    %v1741 = vlaneseq
    %v1742 = vshrl.u32 %v1741, 7
    %v1743 = vsub.s32 2, %v1742
    %v1744 = vrot.slane %v1734, %v1743
    %v1745 = vsub.f32 %v1731, %v1744
    %v1746 = vadd.f32 %v1740, 1e-05
    %v1747 = vrsqrt.pop %v1746
    %v1748 = vlaneseq
    %v1749 = vshrl.u32 %v1748, 7
    %v1750 = vsub.s32 2, %v1749
    %v1751 = vrot.slane %v1747, %v1750
    %1753 = vrot.lane.b32.xlu0 %v1751, 96
    %v1754 = vpop.permute.xlu0 %1753
    %v1756 = vmul.f32 %v1745, %v1754
    %v1757 = vlaneseq
    %v1758 = vshrl.u32 %v1757, 7
    %v1759 = vsub.s32 4, %v1758
    %v1760 = vrot.slane %v35, %v1759
    %v1761 = vmul.f32 %v1756, %v1760
    %v1762 = vlaneseq
    %v1763 = vshrl.u32 %v1762, 7
    %v1764 = vsub.s32 5, %v1763
    %v1765 = vrot.slane %v35, %v1764
    %v1766 = vadd.f32 %v1761, %v1765
    %v1767 = vld [vmem:[#allocation3] sm:$0xff]
    %v1768 = vld [vmem:[#allocation3 + $0x8] sm:$0xff]
    %v1769 = vld [vmem:[#allocation3 + $0x10] sm:$0xff]
    %v1770 = vld [vmem:[#allocation3 + $0x18] sm:$0xff]
    %v1771 = vlaneseq
    %v1772 = vshrl.u32 %v1771, 7
    %v1773 = vsub.s32 6, %v1772
    %v1774 = vrot.slane %v35, %v1773
    %v1776 = vsel %vm934, %v1766, 0
    %1778 = vmatprep.subr.mxu0 0.0
    %1779 = vmatpush1.msra.mxu0 %v1767
    %1780 = vmatprep.subr.mxu0 0.0
    %1781 = vmatpush1.msra.mxu0 %v1768
    %1782 = vmatprep.subr.mxu0 0.0
    %1783 = vmatpush1.msra.mxu0 %v1769
    %1784 = vmatprep.subr.mxu0 0.0
    %1785 = vmatpush1.msra.mxu0 %v1770
    %1786 = vmatprep.subr.mxu0 0.0
    %1787 = vmatpush1.msra.mxu0 0.0
    %1788 = vmatprep.subr.mxu0 0.0
    %1789 = vmatpush1.msra.mxu0 0.0
    %1790 = vmatprep.subr.mxu0 0.0
    %1791 = vmatpush1.msra.mxu0 0.0
    %1792 = vmatprep.subr.mxu0 0.0
    %1793 = vmatpush1.msra.mxu0 0.0
    %1794 = vmatprep.subr.mxu0 0.0
    %1795 = vmatpush1.msra.mxu0 0.0
    %1796 = vmatprep.subr.mxu0 0.0
    %1797 = vmatpush1.msra.mxu0 0.0
    %1798 = vmatprep.subr.mxu0 0.0
    %1799 = vmatpush1.msra.mxu0 0.0
    %1800 = vmatprep.subr.mxu0 0.0
    %1801 = vmatpush1.msra.mxu0 0.0
    %1802 = vmatprep.subr.mxu0 0.0
    %1803 = vmatpush1.msra.mxu0 0.0
    %1804 = vmatprep.subr.mxu0 0.0
    %1805 = vmatpush1.msra.mxu0 0.0
    %1806 = vmatprep.subr.mxu0 0.0
    %1807 = vmatpush1.msra.mxu0 0.0
    %1808 = vmatprep.subr.mxu0 0.0
    %1809 = vmatpush1.msra.mxu0 0.0
    %1810 = vmatprep.subr.mxu0 0.0
    %1811 = vmatpush1.msra.mxu0 0.0
    %1812 = vmatprep.subr.mxu0 0.0
    %1813 = vmatpush1.msra.mxu0 0.0
    %1814 = vmatprep.subr.mxu0 0.0
    %1815 = vmatpush1.msra.mxu0 0.0
    %1816 = vmatprep.subr.mxu0 0.0
    %1817 = vmatpush1.msra.mxu0 0.0
    %1818 = vmatprep.subr.mxu0 0.0
    %1819 = vmatpush1.msra.mxu0 0.0
    %1820 = vmatprep.subr.mxu0 0.0
    %1821 = vmatpush1.msra.mxu0 0.0
    %1822 = vmatprep.subr.mxu0 0.0
    %1823 = vmatpush1.msra.mxu0 0.0
    %1824 = vmatprep.subr.mxu0 0.0
    %1825 = vmatpush1.msra.mxu0 0.0
    %1826 = vmatprep.subr.mxu0 0.0
    %1827 = vmatpush1.msra.mxu0 0.0
    %1828 = vmatprep.subr.mxu0 0.0
    %1829 = vmatpush1.msra.mxu0 0.0
    %1830 = vmatprep.subr.mxu0 0.0
    %1831 = vmatpush1.msra.mxu0 0.0
    %1832 = vmatprep.subr.mxu0 0.0
    %1833 = vmatpush1.msra.mxu0 0.0
    %1834 = vmatprep.subr.mxu0 0.0
    %1835 = vmatpush1.msra.mxu0 0.0
    %1836 = vmatprep.subr.mxu0 0.0
    %1837 = vmatpush1.msra.mxu0 0.0
    %1838 = vmatprep.subr.mxu0 0.0
    %1839 = vmatpush1.msra.mxu0 0.0
    %1840 = vmatprep.subr.mxu0 0.0
    %1841 = vmatpush1.msra.mxu0 0.0
    %1842 = vmatprep.mubr.f32.mxu0 0.0
    %1843 = vmatmul.mubr.f32.gmra.mrb[0].mxu0 %v1776
    %v1844 = vpop.f32.mrb[0].mxu0
    %v1845 = vadd.f32 %v1774, %v1844
    %v1846 = vpop.f32.mrb[0].mxu0
    %1847 = vdwg.mxu0
    %1848 = vst.msk [vmem:[#allocation6] sm:$0x3] %vm1627, %v1845
    // Predicated region
    $region26: #{cnn_block_forward.1} parent=1 // pred_check
      _
    $region27: #{cnn_block_forward.1} parent=1 // pred_check_branch
      %1850 = sbr.rel (0) target = $region29
    $region28: #{cnn_block_forward.1} parent=1 // pred_region
      %s1852 = ssub.s32 32, 32
      %1853 = vsyncadd [#allocation5], %s1852
      %s1855 = sshll.u32 [#allocation6], 4
      %s1856 = int_to_ptr.vmem [resolvable:$true] %s1855
      %1858 = dma.vmem_to_hbm [thread:$0]  %s1856, 32, %s5, [#allocation5]
    $region29: #{cnn_block_forward.1} parent=1 // pred_fallthru
      _
    // Predicated region
    $region30: #{cnn_block_forward.1} parent=1 // pred_check
      _
    $region31: #{cnn_block_forward.1} parent=1 // pred_check_branch
      %1860 = sbr.rel (0) target = $region33
    $region32: #{cnn_block_forward.1} parent=1 // pred_region
      %1861 = dma.done [#allocation5], 32
    $region33: #{cnn_block_forward.1} parent=1 // pred_fallthru
      _
    %1862 = vsyncpa [#allocation4], 1
    %1863 = vsyncpa [#allocation5], 1

</llo_original>
